<compile_context>
chip_gen: v6e
topology: v6e:2x2x1
jax: 0.10.0
libtpu: 0.0.40
codegen_flags: <defaults>
</compile_context>

<pallas_src>
import jax
import jax.numpy as jnp
from jax.experimental import pallas as pl
from jax.experimental.pallas import tpu as pltpu


def _round_up(x: int, m: int) -> int:
    return ((x + m - 1) // m) * m


# ----------------------------------------------------------------------------
# Pallas kernel
# ----------------------------------------------------------------------------
def _mlp_load_balancing_kernel(
    # inputs
    ids_ref,      # (TN, 1)          int32  node vocab ids of this tile (pad -> 0)
    gids_ref,     # (1, TN)          int32  graph id per node of this tile (pad -> -1)
    aux_ref,      # (G_pad, H_pad)   f32    aux features folded into cols H, H+1
    emb_ref,      # (V_pad, H_pad)   f32    embedding table (VMEM resident)
    w1_ref,       # (H_pad, Dg_pad)  f32    Linear1 (emb rows [0,H), aux rows [H,H+2))
    b1_ref,       # (1, Dg_pad)
    w2_ref,       # (Dg_pad, Dg_pad)
    b2_ref,       # (1, Dg_pad)
    w3_ref,       # (Dg_pad, C_pad)
    b3_ref,       # (1, C_pad)
    # output
    out_ref,      # (G_pad, C_pad)   f32 logits (padded)
    # scratch
    hist_ref,     # (G_pad, V_pad)   f32 per-graph vocab-count accumulator
    iota_g_ref,   # (G_pad, TN)      int32 hoisted graph-index plane
    iota_v_ref,   # (TN, V_pad)      int32 hoisted vocab-index plane
):
    t = pl.program_id(0)
    n_tiles = pl.num_programs(0)
    G_pad, TN = iota_g_ref.shape
    V_pad = iota_v_ref.shape[1]

    # --- init: zero histogram, build the iota planes once --------------------
    @pl.when(t == 0)
    def _():
        hist_ref[...] = jnp.zeros_like(hist_ref)
        iota_g_ref[...] = jax.lax.broadcasted_iota(jnp.int32, (G_pad, TN), 0)
        iota_v_ref[...] = jax.lax.broadcasted_iota(jnp.int32, (TN, V_pad), 1)

    # --- per-tile: fused embedding-lookup + segment-sum as a histogram -------
    # seg[g, i] = 1 if node i of this tile belongs to graph g (padding gid = -1
    # matches nothing); oh[i, v] = 1 if node i has vocab id v.
    seg = (gids_ref[...] == iota_g_ref[...]).astype(jnp.float32)   # (G_pad, TN)
    oh = (ids_ref[...] == iota_v_ref[...]).astype(jnp.float32)     # (TN, V_pad)
    hist_ref[...] += jnp.dot(seg, oh, preferred_element_type=jnp.float32)

    # --- finalize: pooled mean (hist @ emb / counts) + 3-layer MLP ------------
    @pl.when(t == n_tiles - 1)
    def _():
        hist = hist_ref[...]                                        # (G_pad, V_pad)
        cnt = jnp.sum(hist, axis=1, keepdims=True)                  # (G_pad, 1) exact
        pooled = jnp.dot(hist, emb_ref[...],
                         preferred_element_type=jnp.float32)        # (G_pad, H_pad)
        # Exact divide for the segment mean; aux features occupy cols H, H+1
        # (zero in pooled, zero rows of the emb table), so a plain add folds them.
        x = pooled / jnp.maximum(cnt, 1.0) + aux_ref[...]
        h = jnp.maximum(
            jnp.dot(x, w1_ref[...], preferred_element_type=jnp.float32) + b1_ref[...],
            0.0)
        # TODO(synk): output_dropout is identity in eval mode; training-mode dropout
        # is not implemented.
        h = jnp.maximum(
            jnp.dot(h, w2_ref[...], preferred_element_type=jnp.float32) + b2_ref[...],
            0.0)
        out_ref[...] = (jnp.dot(h, w3_ref[...], preferred_element_type=jnp.float32)
                        + b3_ref[...])


# ----------------------------------------------------------------------------
# Wrapper: pads shapes to TPU-friendly sizes and launches the kernel
# ----------------------------------------------------------------------------
def mlp_load_balancing_forward(node_vocab_ids, graph_nodes_list,
                               wgsize_log1p, transfer_bytes_log1p,
                               params, num_graphs, *, node_tile=512):
    assert node_tile % 128 == 0, "node tile must be lane-aligned"
    N = node_vocab_ids.shape[0]
    V, H = params["emb"].shape
    Dg = params["w2"].shape[0]
    C = params["w3"].shape[1]
    G = num_graphs

    # Padded sizes: lane-dense features, sublane-aligned graphs, tile-aligned nodes.
    H_pad = _round_up(H + 2, 128)          # H emb cols + 2 aux cols
    V_pad = _round_up(V, 128)
    Dg_pad = _round_up(Dg, 128)
    C_pad = _round_up(C, 128)
    G_pad = _round_up(G, 8)
    N_pad = _round_up(N, node_tile)
    n_tiles = N_pad // node_tile

    f32 = jnp.float32

    # Node ids / graph ids (padded nodes -> id 0, graph -1 so they match nothing).
    ids_p = (jnp.zeros((N_pad,), jnp.int32)
             .at[:N].set(node_vocab_ids.astype(jnp.int32))
             .reshape(N_pad, 1))
    gids_p = (jnp.full((N_pad,), -1, jnp.int32)
              .at[:N].set(graph_nodes_list.astype(jnp.int32))
              .reshape(1, N_pad))

    # Embedding table, zero-padded to (V_pad, H_pad); DMA'd into VMEM exactly once.
    emb_p = jnp.zeros((V_pad, H_pad), f32).at[:V, :H].set(params["emb"].astype(f32))

    # Aux features folded into padded columns H, H+1 of the pooled vector.
    aux_slab = (jnp.zeros((G_pad, H_pad), f32)
                .at[:G, H].set(wgsize_log1p.astype(f32))
                .at[:G, H + 1].set(transfer_bytes_log1p.astype(f32)))

    # Weights, zero-padded; concat([w1h; w1a]) laid out at rows [0,H) and [H,H+2).
    w1_p = (jnp.zeros((H_pad, Dg_pad), f32)
            .at[:H, :Dg].set(params["w1h"].astype(f32))
            .at[H:H + 2, :Dg].set(params["w1a"].astype(f32)))
    b1_p = jnp.zeros((1, Dg_pad), f32).at[:, :Dg].set(params["b1"].astype(f32))
    w2_p = jnp.zeros((Dg_pad, Dg_pad), f32).at[:Dg, :Dg].set(params["w2"].astype(f32))
    b2_p = jnp.zeros((1, Dg_pad), f32).at[:, :Dg].set(params["b2"].astype(f32))
    w3_p = jnp.zeros((Dg_pad, C_pad), f32).at[:Dg, :C].set(params["w3"].astype(f32))
    b3_p = jnp.zeros((1, C_pad), f32).at[:, :C].set(params["b3"].astype(f32))

    grid_spec = pltpu.PrefetchScalarGridSpec(
        num_scalar_prefetch=0,
        grid=(n_tiles,),
        in_specs=[
            pl.BlockSpec((node_tile, 1), lambda t: (t, 0)),        # node ids tile
            pl.BlockSpec((1, node_tile), lambda t: (0, t)),        # graph ids tile
            pl.BlockSpec((G_pad, H_pad), lambda t: (0, 0)),        # aux slab
            pl.BlockSpec((V_pad, H_pad), lambda t: (0, 0)),        # embedding table
            pl.BlockSpec((H_pad, Dg_pad), lambda t: (0, 0)),       # w1
            pl.BlockSpec((1, Dg_pad), lambda t: (0, 0)),           # b1
            pl.BlockSpec((Dg_pad, Dg_pad), lambda t: (0, 0)),      # w2
            pl.BlockSpec((1, Dg_pad), lambda t: (0, 0)),           # b2
            pl.BlockSpec((Dg_pad, C_pad), lambda t: (0, 0)),       # w3
            pl.BlockSpec((1, C_pad), lambda t: (0, 0)),            # b3
        ],
        out_specs=pl.BlockSpec((G_pad, C_pad), lambda t: (0, 0)),
        scratch_shapes=[
            pltpu.VMEM((G_pad, V_pad), jnp.float32),     # histogram accumulator
            pltpu.VMEM((G_pad, node_tile), jnp.int32),   # hoisted graph iota
            pltpu.VMEM((node_tile, V_pad), jnp.int32),   # hoisted vocab iota
        ],
    )

    out_padded = pl.pallas_call(
        _mlp_load_balancing_kernel,
        out_shape=jax.ShapeDtypeStruct((G_pad, C_pad), jnp.float32),
        grid_spec=grid_spec,
        compiler_params=pltpu.CompilerParams(
            dimension_semantics=("arbitrary",),          # node axis is a reduction
        ),
    )(ids_p, gids_p, aux_slab, emb_p, w1_p, b1_p, w2_p, b2_p, w3_p, b3_p)

    return out_padded[:G, :C]


# ----------------------------------------------------------------------------
# Pure-JAX reference (for correctness check)
# ----------------------------------------------------------------------------
def reference_forward(node_vocab_ids, graph_nodes_list,
                      wgsize_log1p, transfer_bytes_log1p,
                      params, num_graphs):
    emb = params["emb"][node_vocab_ids]                                   # (N, H)
    H = emb.shape[1]
    pooled = jnp.zeros((num_graphs, H), jnp.float32).at[graph_nodes_list].add(emb)
    counts = jnp.zeros((num_graphs,), jnp.float32).at[graph_nodes_list].add(1.0)
    pooled = pooled / jnp.maximum(counts, 1.0)[:, None]
    aux = jnp.stack([wgsize_log1p, transfer_bytes_log1p], axis=1)
    w1 = jnp.concatenate([params["w1h"], params["w1a"]], axis=0)
    x = jnp.concatenate([pooled, aux], axis=1)
    h = jax.nn.relu(x @ w1 + params["b1"])
    h = jax.nn.relu(h @ params["w2"] + params["b2"])
    return h @ params["w3"] + params["b3"]


# ----------------------------------------------------------------------------
# Deterministic parameter init
# ----------------------------------------------------------------------------
def init_params(key, vocab_size, hidden_size, num_classes,
                aux_features_dim, graph_x_layer_size):
    ks = jax.random.split(key, 6)
    scale = 0.1
    return {
        "emb": scale * jax.random.normal(ks[0], (vocab_size, hidden_size), jnp.float32),
        "w1h": scale * jax.random.normal(ks[1], (hidden_size, graph_x_layer_size), jnp.float32),
        "w1a": scale * jax.random.normal(ks[2], (aux_features_dim, graph_x_layer_size), jnp.float32),
        "b1": scale * jax.random.normal(ks[3], (1, graph_x_layer_size), jnp.float32),
        "w2": scale * jax.random.normal(ks[4], (graph_x_layer_size, graph_x_layer_size), jnp.float32),
        "b2": jnp.zeros((1, graph_x_layer_size), jnp.float32),
        "w3": scale * jax.random.normal(ks[5], (graph_x_layer_size, num_classes), jnp.float32),
        "b3": jnp.zeros((1, num_classes), jnp.float32),
    }


if __name__ == "__main__":
    # Small synthetic problem: 4 graphs, 1200 nodes total (3 node tiles of 512),
    # so the multi-step histogram-accumulation path is exercised.
    vocab_size = 64
    hidden_size = 32
    num_classes = 2          # discretize_problem=True -> classification logits
    aux_features_dim = 2
    graph_x_layer_size = 32
    num_graphs = 4
    nodes_per_graph = [300, 350, 250, 300]
    num_nodes = sum(nodes_per_graph)

    key = jax.random.PRNGKey(0)
    k_param, k_ids, k_wg, k_tb = jax.random.split(key, 4)

    params = init_params(k_param, vocab_size, hidden_size, num_classes,
                         aux_features_dim, graph_x_layer_size)

    node_vocab_ids = jax.random.randint(k_ids, (num_nodes,), 0, vocab_size, jnp.int32)
    graph_nodes_list = jnp.concatenate(
        [jnp.full((c,), g, jnp.int32) for g, c in enumerate(nodes_per_graph)])
    wgsize_log1p = jax.random.uniform(k_wg, (num_graphs,), jnp.float32) * 5.0
    transfer_bytes_log1p = jax.random.uniform(k_tb, (num_graphs,), jnp.float32) * 10.0

    logits = mlp_load_balancing_forward(node_vocab_ids, graph_nodes_list,
                                        wgsize_log1p, transfer_bytes_log1p,
                                        params, num_graphs)
    logits = jax.block_until_ready(logits)

    ref = reference_forward(node_vocab_ids, graph_nodes_list,
                            wgsize_log1p, transfer_bytes_log1p,
                            params, num_graphs)
    assert logits.shape == (num_graphs, num_classes)
    # Exact divide + exact f32 histogram: only matmul accumulation-order noise left.
    assert jnp.allclose(logits, ref, atol=1e-3, rtol=1e-3), (logits, ref)

    print("KERNEL_OK")
</pallas_src>

<mosaic_0001>
module attributes {stable_mosaic.version = 11 : i64} {
  func.func @_mlp_load_balancing_kernel(%arg0: i32, %arg1: memref<512x1xi32, #tpu.memory_space<vmem>>, %arg2: memref<1x512xi32, #tpu.memory_space<vmem>>, %arg3: memref<8x128xf32, #tpu.memory_space<vmem>>, %arg4: memref<128x128xf32, #tpu.memory_space<vmem>>, %arg5: memref<128x128xf32, #tpu.memory_space<vmem>>, %arg6: memref<1x128xf32, #tpu.memory_space<vmem>>, %arg7: memref<128x128xf32, #tpu.memory_space<vmem>>, %arg8: memref<1x128xf32, #tpu.memory_space<vmem>>, %arg9: memref<128x128xf32, #tpu.memory_space<vmem>>, %arg10: memref<1x128xf32, #tpu.memory_space<vmem>>, %arg11: memref<8x128xf32, #tpu.memory_space<vmem>>, %arg12: memref<8x128xf32, #tpu.memory_space<vmem>>, %arg13: memref<8x512xi32, #tpu.memory_space<vmem>>, %arg14: memref<512x128xi32, #tpu.memory_space<vmem>>) attributes {dimension_semantics = [#tpu.dimension_semantics<arbitrary>], iteration_bounds = array<i64: 3>, scalar_prefetch = 0 : i64, scratch_operands = 3 : i64, tpu.core_type = #tpu.core_type<tc>, window_params = [{transform_indices = @transform_0, window_bounds = array<i64: 512, 1>}, {transform_indices = @transform_1, window_bounds = array<i64: 1, 512>}, {pipeline_mode = #tpu.pipeline_mode<synchronous>, transform_indices = @transform_2, window_bounds = array<i64: 8, 128>}, {pipeline_mode = #tpu.pipeline_mode<synchronous>, transform_indices = @transform_3, window_bounds = array<i64: 128, 128>}, {pipeline_mode = #tpu.pipeline_mode<synchronous>, transform_indices = @transform_4, window_bounds = array<i64: 128, 128>}, {pipeline_mode = #tpu.pipeline_mode<synchronous>, transform_indices = @transform_5, window_bounds = array<i64: 1, 128>}, {pipeline_mode = #tpu.pipeline_mode<synchronous>, transform_indices = @transform_6, window_bounds = array<i64: 128, 128>}, {pipeline_mode = #tpu.pipeline_mode<synchronous>, transform_indices = @transform_7, window_bounds = array<i64: 1, 128>}, {pipeline_mode = #tpu.pipeline_mode<synchronous>, transform_indices = @transform_8, window_bounds = array<i64: 128, 128>}, {pipeline_mode = #tpu.pipeline_mode<synchronous>, transform_indices = @transform_9, window_bounds = array<i64: 1, 128>}, {pipeline_mode = #tpu.pipeline_mode<synchronous>, transform_indices = @transform_10, window_bounds = array<i64: 8, 128>}]} {
    %c0_i32 = arith.constant 0 : i32
    %0 = arith.cmpi eq, %arg0, %c0_i32 : i32
    %1 = arith.extui %0 : i1 to i32
    %c0_i32_0 = arith.constant 0 : i32
    %2 = arith.cmpi ne, %1, %c0_i32_0 : i32
    scf.if %2 {
      %cst_13 = arith.constant 0.000000e+00 : f32
      %22 = vector.broadcast %cst_13 : f32 to vector<8x128xf32>
      %c0_14 = arith.constant 0 : index
      %c0_15 = arith.constant 0 : index
      %23 = vector.load %arg12[%c0_14, %c0_15] : memref<8x128xf32, #tpu.memory_space<vmem>>, vector<8x128xf32>
      tpu.vector_store %arg12[%c0_14, %c0_15], %22 {strides = array<i32>} : memref<8x128xf32, #tpu.memory_space<vmem>>, vector<8x128xf32>,
      %24 = tpu.iota {dimensions = array<i32: 0>} : vector<8x512xi32>
      %c0_16 = arith.constant 0 : index
      %c0_17 = arith.constant 0 : index
      %25 = vector.load %arg13[%c0_16, %c0_17] : memref<8x512xi32, #tpu.memory_space<vmem>>, vector<8x512xi32>
      tpu.vector_store %arg13[%c0_16, %c0_17], %24 {strides = array<i32>} : memref<8x512xi32, #tpu.memory_space<vmem>>, vector<8x512xi32>,
      %26 = tpu.iota {dimensions = array<i32: 1>} : vector<512x128xi32>
      %c0_18 = arith.constant 0 : index
      %c0_19 = arith.constant 0 : index
      %27 = vector.load %arg14[%c0_18, %c0_19] : memref<512x128xi32, #tpu.memory_space<vmem>>, vector<512x128xi32>
      tpu.vector_store %arg14[%c0_18, %c0_19], %26 {strides = array<i32>} : memref<512x128xi32, #tpu.memory_space<vmem>>, vector<512x128xi32>,
    } else {
    }
    %c0 = arith.constant 0 : index
    %c0_1 = arith.constant 0 : index
    %3 = vector.load %arg2[%c0, %c0_1] : memref<1x512xi32, #tpu.memory_space<vmem>>, vector<1x512xi32>
    %c0_2 = arith.constant 0 : index
    %c0_3 = arith.constant 0 : index
    %4 = vector.load %arg13[%c0_2, %c0_3] : memref<8x512xi32, #tpu.memory_space<vmem>>, vector<8x512xi32>
    %5 = vector.broadcast %3 : vector<1x512xi32> to vector<8x512xi32>
    %6 = arith.cmpi eq, %5, %4 : vector<8x512xi32>
    %7 = arith.extui %6 : vector<8x512xi1> to vector<8x512xi32>
    %8 = arith.sitofp %7 : vector<8x512xi32> to vector<8x512xf32>
    %c0_4 = arith.constant 0 : index
    %c0_5 = arith.constant 0 : index
    %9 = vector.load %arg1[%c0_4, %c0_5] : memref<512x1xi32, #tpu.memory_space<vmem>>, vector<512x1xi32>
    %c0_6 = arith.constant 0 : index
    %c0_7 = arith.constant 0 : index
    %10 = vector.load %arg14[%c0_6, %c0_7] : memref<512x128xi32, #tpu.memory_space<vmem>>, vector<512x128xi32>
    %11 = vector.broadcast %9 : vector<512x1xi32> to vector<512x128xi32>
    %12 = arith.cmpi eq, %11, %10 : vector<512x128xi32>
    %13 = arith.extui %12 : vector<512x128xi1> to vector<512x128xi32>
    %14 = arith.sitofp %13 : vector<512x128xi32> to vector<512x128xf32>
    %c0_8 = arith.constant 0 : index
    %c0_9 = arith.constant 0 : index
    %15 = vector.load %arg12[%c0_8, %c0_9] : memref<8x128xf32, #tpu.memory_space<vmem>>, vector<8x128xf32>
    %cst = arith.constant dense<0.000000e+00> : vector<8x128xf32>
    %16 = tpu.matmul %8, %14, %cst {dimension_numbers = #tpu.dot_dimension_numbers<[1], [0], [0], [1], [0, 0, 1, 1], [], []>} : vector<8x512xf32>, vector<512x128xf32>, vector<8x128xf32> -> vector<8x128xf32>
    %17 = arith.addf %15, %16 : vector<8x128xf32>
    %c0_10 = arith.constant 0 : index
    %c0_11 = arith.constant 0 : index
    %18 = vector.load %arg12[%c0_10, %c0_11] : memref<8x128xf32, #tpu.memory_space<vmem>>, vector<8x128xf32>
    tpu.vector_store %arg12[%c0_10, %c0_11], %17 {strides = array<i32>} : memref<8x128xf32, #tpu.memory_space<vmem>>, vector<8x128xf32>,
    %c2_i32 = arith.constant 2 : i32
    %19 = arith.cmpi eq, %arg0, %c2_i32 : i32
    %20 = arith.extui %19 : i1 to i32
    %c0_i32_12 = arith.constant 0 : i32
    %21 = arith.cmpi ne, %20, %c0_i32_12 : i32
    scf.if %21 {
      %c0_13 = arith.constant 0 : index
      %c0_14 = arith.constant 0 : index
      %22 = vector.load %arg12[%c0_13, %c0_14] : memref<8x128xf32, #tpu.memory_space<vmem>>, vector<8x128xf32>
      %cst_15 = arith.constant dense<0.000000e+00> : vector<8xf32>
      %23 = vector.multi_reduction <add>, %22, %cst_15 [1] : vector<8x128xf32> to vector<8xf32>
      %24 = vector.shape_cast %23 : vector<8xf32> to vector<8x1xf32>
      %c0_16 = arith.constant 0 : index
      %c0_17 = arith.constant 0 : index
      %25 = vector.load %arg4[%c0_16, %c0_17] : memref<128x128xf32, #tpu.memory_space<vmem>>, vector<128x128xf32>
      %cst_18 = arith.constant dense<0.000000e+00> : vector<8x128xf32>
      %26 = tpu.matmul %22, %25, %cst_18 {dimension_numbers = #tpu.dot_dimension_numbers<[1], [0], [0], [1], [0, 0, 1, 1], [], []>} : vector<8x128xf32>, vector<128x128xf32>, vector<8x128xf32> -> vector<8x128xf32>
      %cst_19 = arith.constant 1.000000e+00 : f32
      %27 = vector.broadcast %cst_19 : f32 to vector<8x1xf32>
      %28 = arith.maximumf %24, %27 : vector<8x1xf32>
      %29 = vector.broadcast %28 : vector<8x1xf32> to vector<8x128xf32>
      %30 = arith.divf %26, %29 : vector<8x128xf32>
      %c0_20 = arith.constant 0 : index
      %c0_21 = arith.constant 0 : index
      %31 = vector.load %arg3[%c0_20, %c0_21] : memref<8x128xf32, #tpu.memory_space<vmem>>, vector<8x128xf32>
      %32 = arith.addf %30, %31 : vector<8x128xf32>
      %c0_22 = arith.constant 0 : index
      %c0_23 = arith.constant 0 : index
      %33 = vector.load %arg5[%c0_22, %c0_23] : memref<128x128xf32, #tpu.memory_space<vmem>>, vector<128x128xf32>
      %cst_24 = arith.constant dense<0.000000e+00> : vector<8x128xf32>
      %34 = tpu.matmul %32, %33, %cst_24 {dimension_numbers = #tpu.dot_dimension_numbers<[1], [0], [0], [1], [0, 0, 1, 1], [], []>} : vector<8x128xf32>, vector<128x128xf32>, vector<8x128xf32> -> vector<8x128xf32>
      %c0_25 = arith.constant 0 : index
      %c0_26 = arith.constant 0 : index
      %35 = vector.load %arg6[%c0_25, %c0_26] : memref<1x128xf32, #tpu.memory_space<vmem>>, vector<1x128xf32>
      %36 = vector.broadcast %35 : vector<1x128xf32> to vector<8x128xf32>
      %37 = arith.addf %34, %36 : vector<8x128xf32>
      %cst_27 = arith.constant 0.000000e+00 : f32
      %38 = vector.broadcast %cst_27 : f32 to vector<8x128xf32>
      %39 = arith.maximumf %37, %38 : vector<8x128xf32>
      %c0_28 = arith.constant 0 : index
      %c0_29 = arith.constant 0 : index
      %40 = vector.load %arg7[%c0_28, %c0_29] : memref<128x128xf32, #tpu.memory_space<vmem>>, vector<128x128xf32>
      %cst_30 = arith.constant dense<0.000000e+00> : vector<8x128xf32>
      %41 = tpu.matmul %39, %40, %cst_30 {dimension_numbers = #tpu.dot_dimension_numbers<[1], [0], [0], [1], [0, 0, 1, 1], [], []>} : vector<8x128xf32>, vector<128x128xf32>, vector<8x128xf32> -> vector<8x128xf32>
      %c0_31 = arith.constant 0 : index
      %c0_32 = arith.constant 0 : index
      %42 = vector.load %arg8[%c0_31, %c0_32] : memref<1x128xf32, #tpu.memory_space<vmem>>, vector<1x128xf32>
      %43 = vector.broadcast %42 : vector<1x128xf32> to vector<8x128xf32>
      %44 = arith.addf %41, %43 : vector<8x128xf32>
      %cst_33 = arith.constant 0.000000e+00 : f32
      %45 = vector.broadcast %cst_33 : f32 to vector<8x128xf32>
      %46 = arith.maximumf %44, %45 : vector<8x128xf32>
      %c0_34 = arith.constant 0 : index
      %c0_35 = arith.constant 0 : index
      %47 = vector.load %arg9[%c0_34, %c0_35] : memref<128x128xf32, #tpu.memory_space<vmem>>, vector<128x128xf32>
      %cst_36 = arith.constant dense<0.000000e+00> : vector<8x128xf32>
      %48 = tpu.matmul %46, %47, %cst_36 {dimension_numbers = #tpu.dot_dimension_numbers<[1], [0], [0], [1], [0, 0, 1, 1], [], []>} : vector<8x128xf32>, vector<128x128xf32>, vector<8x128xf32> -> vector<8x128xf32>
      %c0_37 = arith.constant 0 : index
      %c0_38 = arith.constant 0 : index
      %49 = vector.load %arg10[%c0_37, %c0_38] : memref<1x128xf32, #tpu.memory_space<vmem>>, vector<1x128xf32>
      %50 = vector.broadcast %49 : vector<1x128xf32> to vector<8x128xf32>
      %51 = arith.addf %48, %50 : vector<8x128xf32>
      %c0_39 = arith.constant 0 : index
      %c0_40 = arith.constant 0 : index
      %52 = vector.load %arg11[%c0_39, %c0_40] : memref<8x128xf32, #tpu.memory_space<vmem>>, vector<8x128xf32>
      tpu.vector_store %arg11[%c0_39, %c0_40], %51 {strides = array<i32>} : memref<8x128xf32, #tpu.memory_space<vmem>>, vector<8x128xf32>,
    } else {
    }
    return
  }
  func.func @transform_0(%arg0: i32) -> (i32, i32) {
    %c0_i32 = arith.constant 0 : i32
    %c0_i32_0 = arith.constant 0 : i32
    return %arg0, %c0_i32 : i32, i32
  }
  func.func @transform_1(%arg0: i32) -> (i32, i32) {
    %c0_i32 = arith.constant 0 : i32
    %c0_i32_0 = arith.constant 0 : i32
    return %c0_i32, %arg0 : i32, i32
  }
  func.func @transform_2(%arg0: i32) -> (i32, i32) {
    %c0_i32 = arith.constant 0 : i32
    %c0_i32_0 = arith.constant 0 : i32
    %c0_i32_1 = arith.constant 0 : i32
    return %c0_i32, %c0_i32_0 : i32, i32
  }
  func.func @transform_3(%arg0: i32) -> (i32, i32) {
    %c0_i32 = arith.constant 0 : i32
    %c0_i32_0 = arith.constant 0 : i32
    %c0_i32_1 = arith.constant 0 : i32
    return %c0_i32, %c0_i32_0 : i32, i32
  }
  func.func @transform_4(%arg0: i32) -> (i32, i32) {
    %c0_i32 = arith.constant 0 : i32
    %c0_i32_0 = arith.constant 0 : i32
    %c0_i32_1 = arith.constant 0 : i32
    return %c0_i32, %c0_i32_0 : i32, i32
  }
  func.func @transform_5(%arg0: i32) -> (i32, i32) {
    %c0_i32 = arith.constant 0 : i32
    %c0_i32_0 = arith.constant 0 : i32
    %c0_i32_1 = arith.constant 0 : i32
    return %c0_i32, %c0_i32_0 : i32, i32
  }
  func.func @transform_6(%arg0: i32) -> (i32, i32) {
    %c0_i32 = arith.constant 0 : i32
    %c0_i32_0 = arith.constant 0 : i32
    %c0_i32_1 = arith.constant 0 : i32
    return %c0_i32, %c0_i32_0 : i32, i32
  }
  func.func @transform_7(%arg0: i32) -> (i32, i32) {
    %c0_i32 = arith.constant 0 : i32
    %c0_i32_0 = arith.constant 0 : i32
    %c0_i32_1 = arith.constant 0 : i32
    return %c0_i32, %c0_i32_0 : i32, i32
  }
  func.func @transform_8(%arg0: i32) -> (i32, i32) {
    %c0_i32 = arith.constant 0 : i32
    %c0_i32_0 = arith.constant 0 : i32
    %c0_i32_1 = arith.constant 0 : i32
    return %c0_i32, %c0_i32_0 : i32, i32
  }
  func.func @transform_9(%arg0: i32) -> (i32, i32) {
    %c0_i32 = arith.constant 0 : i32
    %c0_i32_0 = arith.constant 0 : i32
    %c0_i32_1 = arith.constant 0 : i32
    return %c0_i32, %c0_i32_0 : i32, i32
  }
  func.func @transform_10(%arg0: i32) -> (i32, i32) {
    %c0_i32 = arith.constant 0 : i32
    %c0_i32_0 = arith.constant 0 : i32
    %c0_i32_1 = arith.constant 0 : i32
    return %c0_i32, %c0_i32_0 : i32, i32
  }
}

</mosaic_0001>

<llo_original>
// kernel: tpu_custom_call.1
$region0: #{tpu_custom_call.1}
  #allocation0 [shape = 'u32[]', space=smem, size = 0x4, offset = 0x4, fixed_abs, tag = 'smem constant byte address 0x4 - core index']
  #allocation1 [shape = 'u32[144,128]{1,0:T(1,128)}', space=vmem, size = 0x12000, scoped, tag = 'internal scratch']
  #allocation2 [shape = 'f32[8,128]{1,0:T(8,128)}', space=vmem, size = 0x1000, scoped, tag = 'scratch operand']
  #allocation3 [shape = 's32[8,512]{1,0:T(8,128)}', space=vmem, size = 0x4000, scoped, tag = 'scratch operand']
  #allocation4 [shape = 's32[512,128]{1,0:T(8,128)}', space=vmem, size = 0x40000, scoped, tag = 'scratch operand']
  %s0 = inlined_call_operand.vmem [shape: s32[1536,1], index: 0, kind: input, shape index: {}]
  %s1 = inlined_call_operand.vmem [shape: s32[1,1536], index: 1, kind: input, shape index: {}]
  %s2 = inlined_call_operand.vmem [shape: f32[8,128], index: 2, kind: input, shape index: {}]
  %s3 = inlined_call_operand.vmem [shape: f32[128,128], index: 3, kind: input, shape index: {}]
  %s4 = inlined_call_operand.vmem [shape: f32[128,128], index: 4, kind: input, shape index: {}]
  %s5 = inlined_call_operand.vmem [shape: f32[1,128], index: 5, kind: input, shape index: {}]
  %s6 = inlined_call_operand.vmem [shape: f32[128,128], index: 6, kind: input, shape index: {}]
  %s7 = inlined_call_operand.vmem [shape: f32[1,128], index: 7, kind: input, shape index: {}]
  %s8 = inlined_call_operand.vmem [shape: f32[128,128], index: 8, kind: input, shape index: {}]
  %s9 = inlined_call_operand.vmem [shape: f32[1,128], index: 9, kind: input, shape index: {}]
  %s10 = inlined_call_operand.hbm [shape: f32[8,128], index: 10, kind: output, shape index: {}]
  %s11 = sld [smem:[#allocation0]]
  $region81: #{tpu_custom_call.1} parent=0
    _
  %s13 = ssub.s32 1, %s11
  %s14 = scalar_select 0, %s13, %s11
  $region1: #{tpu_custom_call.1} parent=0
    #allocation5 [shape = 'u8[4096]{0}', space=vmem, size = 0x1000, scoped, tag = 'output window, operand 0, single buffered']
    #allocation6 [shape = 's32[2]{0}', space=sflag, size = 0x8, scoped, tag = 'scoped memory for tpu_custom_call.1']
    %15 = vsyncpa [#allocation6], 0
    loop: start=0, step=1, limit=5
    $region2: #{tpu_custom_call.1} parent=1 // loop_pre_header
      _
    $region3: #{tpu_custom_call.1} parent=1 // loop_header
      %s17 = sphi 0, %s21
      %p18 = scmp.ge.s32.totalorder %s17, 5
      %s27 = sphi 0, %s29
      %s30 = sphi 0, %s27
      %s31 = sphi 0, %s30
      %s47 = sphi 0, %s31
      %s53 = sphi 0, %s55
      %s56 = sphi 0, %s53
      %s57 = sphi 0, %s56
      %s73 = sphi 0, %s57
      %s77 = sphi 0, %s77
      %s79 = sphi 0, %s77
      %s80 = sphi 0, %s79
      %s94 = sphi 0, %s80
      %s98 = sphi 0, %s98
      %s100 = sphi 0, %s98
      %s101 = sphi 0, %s100
      %s115 = sphi 0, %s101
      %s119 = sphi 0, %s119
      %s121 = sphi 0, %s119
      %s122 = sphi 0, %s121
      %s136 = sphi 0, %s122
      %s140 = sphi 0, %s140
      %s142 = sphi 0, %s140
      %s143 = sphi 0, %s142
      %s157 = sphi 0, %s143
      %s161 = sphi 0, %s161
      %s163 = sphi 0, %s161
      %s164 = sphi 0, %s163
      %s178 = sphi 0, %s164
      %s182 = sphi 0, %s182
      %s184 = sphi 0, %s182
      %s185 = sphi 0, %s184
      %s199 = sphi 0, %s185
      %s203 = sphi 0, %s203
      %s205 = sphi 0, %s203
      %s206 = sphi 0, %s205
      %s220 = sphi 0, %s206
      %s224 = sphi 0, %s224
      %s226 = sphi 0, %s224
      %s227 = sphi 0, %s226
      %s241 = sphi 0, %s227
      %s245 = sphi 0, %s245
      %s247 = sphi 0, %s245
      %s248 = sphi 0, %s247
      %s262 = sphi 0, %s248
    $region4: #{tpu_custom_call.1} parent=1 // loop_header_branch
      %20 = sbr.rel (%p18) target = $region8
    $region5: #{tpu_custom_call.1} parent=1 // loop_body
      %s22 = ssub.s32 %s17, 1
      %s23 = ssub.s32 %s17, 2
      %s24 = sadd.s32 %s17, 1
      %s25 = ssub.s32 %s17, %s24
      %p26 = scmp.eq.s32.totalorder %s25, 0
      %s28 = sadd.s32 %s27, 1
      %s29 = scalar_select %p26, %s27, %s28
      %p32 = pneg %p26
      %p33 = scmp.eq.s32.totalorder %s17, 2
      %p34 = por %p32, %p33
      %p35 = scmp.ne.s32.totalorder %s27, %s30
      %p36 = scmp.eq.s32.totalorder %s17, 0
      %p37 = por %p35, %p36
      %p38 = scmp.ne.s32.totalorder %s27, %s30
      %p39 = scmp.eq.s32.totalorder %s22, 2
      %p40 = por %p38, %p39
      %p41 = scmp.ne.s32.totalorder %s30, %s31
      %p42 = scmp.eq.s32.totalorder %s22, 0
      %p43 = por %p41, %p42
      %p44 = scmp.ne.s32.totalorder %s30, %s31
      %p45 = scmp.eq.s32.totalorder %s23, 2
      %p46 = por %p44, %p45
      %p48 = scmp.ne.s32.totalorder %s31, %s47
      %p49 = scmp.eq.s32.totalorder %s23, 0
      %p50 = por %p48, %p49
      %s51 = ssub.s32 %s17, %s24
      %p52 = scmp.eq.s32.totalorder %s51, 0
      %s54 = sadd.s32 %s53, 1
      %s55 = scalar_select %p52, %s53, %s54
      %p58 = pneg %p52
      %p59 = scmp.eq.s32.totalorder %s17, 2
      %p60 = por %p58, %p59
      %p61 = scmp.ne.s32.totalorder %s53, %s56
      %p62 = scmp.eq.s32.totalorder %s17, 0
      %p63 = por %p61, %p62
      %p64 = scmp.ne.s32.totalorder %s53, %s56
      %p65 = scmp.eq.s32.totalorder %s22, 2
      %p66 = por %p64, %p65
      %p67 = scmp.ne.s32.totalorder %s56, %s57
      %p68 = scmp.eq.s32.totalorder %s22, 0
      %p69 = por %p67, %p68
      %p70 = scmp.ne.s32.totalorder %s56, %s57
      %p71 = scmp.eq.s32.totalorder %s23, 2
      %p72 = por %p70, %p71
      %p74 = scmp.ne.s32.totalorder %s57, %s73
      %p75 = scmp.eq.s32.totalorder %s23, 0
      %p76 = por %p74, %p75
      %s78 = sadd.s32 %s77, 1
      %p81 = scmp.eq.s32.totalorder %s17, 2
      %p82 = scmp.ne.s32.totalorder %s77, %s79
      %p83 = scmp.eq.s32.totalorder %s17, 0
      %p84 = por %p82, %p83
      %p85 = scmp.ne.s32.totalorder %s77, %s79
      %p86 = scmp.eq.s32.totalorder %s22, 2
      %p87 = por %p85, %p86
      %p88 = scmp.ne.s32.totalorder %s79, %s80
      %p89 = scmp.eq.s32.totalorder %s22, 0
      %p90 = por %p88, %p89
      %p91 = scmp.ne.s32.totalorder %s79, %s80
      %p92 = scmp.eq.s32.totalorder %s23, 2
      %p93 = por %p91, %p92
      %p95 = scmp.ne.s32.totalorder %s80, %s94
      %p96 = scmp.eq.s32.totalorder %s23, 0
      %p97 = por %p95, %p96
      %s99 = sadd.s32 %s98, 1
      %p102 = scmp.eq.s32.totalorder %s17, 2
      %p103 = scmp.ne.s32.totalorder %s98, %s100
      %p104 = scmp.eq.s32.totalorder %s17, 0
      %p105 = por %p103, %p104
      %p106 = scmp.ne.s32.totalorder %s98, %s100
      %p107 = scmp.eq.s32.totalorder %s22, 2
      %p108 = por %p106, %p107
      %p109 = scmp.ne.s32.totalorder %s100, %s101
      %p110 = scmp.eq.s32.totalorder %s22, 0
      %p111 = por %p109, %p110
      %p112 = scmp.ne.s32.totalorder %s100, %s101
      %p113 = scmp.eq.s32.totalorder %s23, 2
      %p114 = por %p112, %p113
      %p116 = scmp.ne.s32.totalorder %s101, %s115
      %p117 = scmp.eq.s32.totalorder %s23, 0
      %p118 = por %p116, %p117
      %s120 = sadd.s32 %s119, 1
      %p123 = scmp.eq.s32.totalorder %s17, 2
      %p124 = scmp.ne.s32.totalorder %s119, %s121
      %p125 = scmp.eq.s32.totalorder %s17, 0
      %p126 = por %p124, %p125
      %p127 = scmp.ne.s32.totalorder %s119, %s121
      %p128 = scmp.eq.s32.totalorder %s22, 2
      %p129 = por %p127, %p128
      %p130 = scmp.ne.s32.totalorder %s121, %s122
      %p131 = scmp.eq.s32.totalorder %s22, 0
      %p132 = por %p130, %p131
      %p133 = scmp.ne.s32.totalorder %s121, %s122
      %p134 = scmp.eq.s32.totalorder %s23, 2
      %p135 = por %p133, %p134
      %p137 = scmp.ne.s32.totalorder %s122, %s136
      %p138 = scmp.eq.s32.totalorder %s23, 0
      %p139 = por %p137, %p138
      %s141 = sadd.s32 %s140, 1
      %p144 = scmp.eq.s32.totalorder %s17, 2
      %p145 = scmp.ne.s32.totalorder %s140, %s142
      %p146 = scmp.eq.s32.totalorder %s17, 0
      %p147 = por %p145, %p146
      %p148 = scmp.ne.s32.totalorder %s140, %s142
      %p149 = scmp.eq.s32.totalorder %s22, 2
      %p150 = por %p148, %p149
      %p151 = scmp.ne.s32.totalorder %s142, %s143
      %p152 = scmp.eq.s32.totalorder %s22, 0
      %p153 = por %p151, %p152
      %p154 = scmp.ne.s32.totalorder %s142, %s143
      %p155 = scmp.eq.s32.totalorder %s23, 2
      %p156 = por %p154, %p155
      %p158 = scmp.ne.s32.totalorder %s143, %s157
      %p159 = scmp.eq.s32.totalorder %s23, 0
      %p160 = por %p158, %p159
      %s162 = sadd.s32 %s161, 1
      %p165 = scmp.eq.s32.totalorder %s17, 2
      %p166 = scmp.ne.s32.totalorder %s161, %s163
      %p167 = scmp.eq.s32.totalorder %s17, 0
      %p168 = por %p166, %p167
      %p169 = scmp.ne.s32.totalorder %s161, %s163
      %p170 = scmp.eq.s32.totalorder %s22, 2
      %p171 = por %p169, %p170
      %p172 = scmp.ne.s32.totalorder %s163, %s164
      %p173 = scmp.eq.s32.totalorder %s22, 0
      %p174 = por %p172, %p173
      %p175 = scmp.ne.s32.totalorder %s163, %s164
      %p176 = scmp.eq.s32.totalorder %s23, 2
      %p177 = por %p175, %p176
      %p179 = scmp.ne.s32.totalorder %s164, %s178
      %p180 = scmp.eq.s32.totalorder %s23, 0
      %p181 = por %p179, %p180
      %s183 = sadd.s32 %s182, 1
      %p186 = scmp.eq.s32.totalorder %s17, 2
      %p187 = scmp.ne.s32.totalorder %s182, %s184
      %p188 = scmp.eq.s32.totalorder %s17, 0
      %p189 = por %p187, %p188
      %p190 = scmp.ne.s32.totalorder %s182, %s184
      %p191 = scmp.eq.s32.totalorder %s22, 2
      %p192 = por %p190, %p191
      %p193 = scmp.ne.s32.totalorder %s184, %s185
      %p194 = scmp.eq.s32.totalorder %s22, 0
      %p195 = por %p193, %p194
      %p196 = scmp.ne.s32.totalorder %s184, %s185
      %p197 = scmp.eq.s32.totalorder %s23, 2
      %p198 = por %p196, %p197
      %p200 = scmp.ne.s32.totalorder %s185, %s199
      %p201 = scmp.eq.s32.totalorder %s23, 0
      %p202 = por %p200, %p201
      %s204 = sadd.s32 %s203, 1
      %p207 = scmp.eq.s32.totalorder %s17, 2
      %p208 = scmp.ne.s32.totalorder %s203, %s205
      %p209 = scmp.eq.s32.totalorder %s17, 0
      %p210 = por %p208, %p209
      %p211 = scmp.ne.s32.totalorder %s203, %s205
      %p212 = scmp.eq.s32.totalorder %s22, 2
      %p213 = por %p211, %p212
      %p214 = scmp.ne.s32.totalorder %s205, %s206
      %p215 = scmp.eq.s32.totalorder %s22, 0
      %p216 = por %p214, %p215
      %p217 = scmp.ne.s32.totalorder %s205, %s206
      %p218 = scmp.eq.s32.totalorder %s23, 2
      %p219 = por %p217, %p218
      %p221 = scmp.ne.s32.totalorder %s206, %s220
      %p222 = scmp.eq.s32.totalorder %s23, 0
      %p223 = por %p221, %p222
      %s225 = sadd.s32 %s224, 1
      %p228 = scmp.eq.s32.totalorder %s17, 2
      %p229 = scmp.ne.s32.totalorder %s224, %s226
      %p230 = scmp.eq.s32.totalorder %s17, 0
      %p231 = por %p229, %p230
      %p232 = scmp.ne.s32.totalorder %s224, %s226
      %p233 = scmp.eq.s32.totalorder %s22, 2
      %p234 = por %p232, %p233
      %p235 = scmp.ne.s32.totalorder %s226, %s227
      %p236 = scmp.eq.s32.totalorder %s22, 0
      %p237 = por %p235, %p236
      %p238 = scmp.ne.s32.totalorder %s226, %s227
      %p239 = scmp.eq.s32.totalorder %s23, 2
      %p240 = por %p238, %p239
      %p242 = scmp.ne.s32.totalorder %s227, %s241
      %p243 = scmp.eq.s32.totalorder %s23, 0
      %p244 = por %p242, %p243
      %s246 = sadd.s32 %s245, 1
      %p249 = scmp.eq.s32.totalorder %s17, 2
      %p250 = scmp.ne.s32.totalorder %s245, %s247
      %p251 = scmp.eq.s32.totalorder %s17, 0
      %p252 = por %p250, %p251
      %p253 = scmp.ne.s32.totalorder %s245, %s247
      %p254 = scmp.eq.s32.totalorder %s22, 2
      %p255 = por %p253, %p254
      %p256 = scmp.ne.s32.totalorder %s247, %s248
      %p257 = scmp.eq.s32.totalorder %s22, 0
      %p258 = por %p256, %p257
      %p259 = scmp.ne.s32.totalorder %s247, %s248
      %p260 = scmp.eq.s32.totalorder %s23, 2
      %p261 = por %p259, %p260
      %p263 = scmp.ne.s32.totalorder %s248, %s262
      %p264 = scmp.eq.s32.totalorder %s23, 0
      %p265 = por %p263, %p264
      %p266 = scmp.le.s32.totalorder 1, %s17
      %p267 = scmp.lt.s32.totalorder %s17, 4
      %p268 = pnand %p266, %p267
      %p269 = pneg %p268
      // Predicated region
      $region9: #{tpu_custom_call.1} parent=5 // pred_check
        _
      $region10: #{tpu_custom_call.1} parent=5 // pred_check_branch
        %271 = sbr.rel (%p268) target = $region12
      $region11: #{tpu_custom_call.1} parent=5 // pred_region
        %s272 = ssub.s32 %s17, 1
        // Predicated region
        $region13: #{tpu_custom_call.1} parent=11 // pred_check
          %p273 = pneg %p90
        $region14: #{tpu_custom_call.1} parent=11 // pred_check_branch
          %275 = sbr.rel (%p273) target = $region16
        $region15: #{tpu_custom_call.1} parent=11 // pred_region
          _
        $region16: #{tpu_custom_call.1} parent=11 // pred_fallthru
          _
        // Predicated region
        $region17: #{tpu_custom_call.1} parent=11 // pred_check
          %p276 = pneg %p111
        $region18: #{tpu_custom_call.1} parent=11 // pred_check_branch
          %278 = sbr.rel (%p276) target = $region20
        $region19: #{tpu_custom_call.1} parent=11 // pred_region
          _
        $region20: #{tpu_custom_call.1} parent=11 // pred_fallthru
          _
        // Predicated region
        $region21: #{tpu_custom_call.1} parent=11 // pred_check
          %p279 = pneg %p132
        $region22: #{tpu_custom_call.1} parent=11 // pred_check_branch
          %281 = sbr.rel (%p279) target = $region24
        $region23: #{tpu_custom_call.1} parent=11 // pred_region
          _
        $region24: #{tpu_custom_call.1} parent=11 // pred_fallthru
          _
        // Predicated region
        $region25: #{tpu_custom_call.1} parent=11 // pred_check
          %p282 = pneg %p153
        $region26: #{tpu_custom_call.1} parent=11 // pred_check_branch
          %284 = sbr.rel (%p282) target = $region28
        $region27: #{tpu_custom_call.1} parent=11 // pred_region
          _
        $region28: #{tpu_custom_call.1} parent=11 // pred_fallthru
          _
        // Predicated region
        $region29: #{tpu_custom_call.1} parent=11 // pred_check
          %p285 = pneg %p174
        $region30: #{tpu_custom_call.1} parent=11 // pred_check_branch
          %287 = sbr.rel (%p285) target = $region32
        $region31: #{tpu_custom_call.1} parent=11 // pred_region
          _
        $region32: #{tpu_custom_call.1} parent=11 // pred_fallthru
          _
        // Predicated region
        $region33: #{tpu_custom_call.1} parent=11 // pred_check
          %p288 = pneg %p195
        $region34: #{tpu_custom_call.1} parent=11 // pred_check_branch
          %290 = sbr.rel (%p288) target = $region36
        $region35: #{tpu_custom_call.1} parent=11 // pred_region
          _
        $region36: #{tpu_custom_call.1} parent=11 // pred_fallthru
          _
        // Predicated region
        $region37: #{tpu_custom_call.1} parent=11 // pred_check
          %p291 = pneg %p216
        $region38: #{tpu_custom_call.1} parent=11 // pred_check_branch
          %293 = sbr.rel (%p291) target = $region40
        $region39: #{tpu_custom_call.1} parent=11 // pred_region
          _
        $region40: #{tpu_custom_call.1} parent=11 // pred_fallthru
          _
        // Predicated region
        $region41: #{tpu_custom_call.1} parent=11 // pred_check
          %p294 = pneg %p237
        $region42: #{tpu_custom_call.1} parent=11 // pred_check_branch
          %296 = sbr.rel (%p294) target = $region44
        $region43: #{tpu_custom_call.1} parent=11 // pred_region
          _
        $region44: #{tpu_custom_call.1} parent=11 // pred_fallthru
          _
      $region12: #{tpu_custom_call.1} parent=5 // pred_fallthru
        _
      %p297 = scmp.lt.s32.totalorder %s17, 3
      // Predicated region
      $region45: #{tpu_custom_call.1} parent=5 // pred_check
        %p298 = pneg %p297
      $region46: #{tpu_custom_call.1} parent=5 // pred_check_branch
        %300 = sbr.rel (%p298) target = $region48
      $region47: #{tpu_custom_call.1} parent=5 // pred_region
        // Predicated region
        $region49: #{tpu_custom_call.1} parent=47 // pred_check
          %p301 = pneg %p37
        $region50: #{tpu_custom_call.1} parent=47 // pred_check_branch
          %303 = sbr.rel (%p301) target = $region52
        $region51: #{tpu_custom_call.1} parent=47 // pred_region
          %s304 = smul.u32 64, %s17
          %p305 = scmp.lt.s32.totalorder %s304, 191
          %s306 = scalar_select %p305, %s304, 191
          %s307 = smul.addr %s306, 8
          %s308 = scalar_lea.vmem %s0, %s307
          %s309 = smul.u32 64, %s17
        $region52: #{tpu_custom_call.1} parent=47 // pred_fallthru
          _
        // Predicated region
        $region53: #{tpu_custom_call.1} parent=47 // pred_check
          %p310 = pneg %p63
        $region54: #{tpu_custom_call.1} parent=47 // pred_check_branch
          %312 = sbr.rel (%p310) target = $region56
        $region55: #{tpu_custom_call.1} parent=47 // pred_region
          %s313 = smul.u32 4, %s17
          %p314 = scmp.lt.s32.totalorder %s313, 11
          %s315 = scalar_select %p314, %s313, 11
          %s316 = scalar_lea.vmem %s1, %s315
          %s317 = smul.u32 4, %s17
        $region56: #{tpu_custom_call.1} parent=47 // pred_fallthru
          _
      $region48: #{tpu_custom_call.1} parent=5 // pred_fallthru
        _
      %p318 = scmp.le.s32.totalorder 1, %s17
      %p319 = scmp.lt.s32.totalorder %s17, 4
      %p320 = pnand %p318, %p319
      %p321 = pneg %p320
      // Predicated region
      $region57: #{tpu_custom_call.1} parent=5 // pred_check
        _
      $region58: #{tpu_custom_call.1} parent=5 // pred_check_branch
        %323 = sbr.rel (%p320) target = $region60
      $region59: #{tpu_custom_call.1} parent=5 // pred_region
        %s324 = ssub.s32 %s17, 1
        %s325 = smul.u32 64, %s22
        %p326 = scmp.lt.s32.totalorder %s325, 191
        %s327 = scalar_select %p326, %s325, 191
        %s328 = smul.addr %s327, 8
        %s329 = scalar_lea.vmem %s0, %s328
        %p330 = pneg %p43
        %p331 = pneg %p40
        %s332 = smul.u32 4, %s22
        %p333 = scmp.lt.s32.totalorder %s332, 11
        %s334 = scalar_select %p333, %s332, 11
        %s335 = scalar_lea.vmem %s1, %s334
        %p336 = pneg %p69
        %p337 = pneg %p66
        %p338 = pneg %p90
        %p339 = pneg %p87
        %p340 = pneg %p111
        %p341 = pneg %p108
        %p342 = pneg %p132
        %p343 = pneg %p129
        %p344 = pneg %p153
        %p345 = pneg %p150
        %p346 = pneg %p174
        %p347 = pneg %p171
        %p348 = pneg %p195
        %p349 = pneg %p192
        %p350 = pneg %p216
        %p351 = pneg %p213
        %p352 = pneg %p237
        %p353 = pneg %p234
        %p354 = pneg %p258
        %p355 = pneg %p255
        %s356 = smul.u32 64, %s22
        %p357 = scmp.lt.s32.totalorder %s356, 191
        %s358 = scalar_select %p357, %s356, 191
        %s359 = smul.addr %s358, 8
        %s360 = scalar_lea.vmem %s0, %s359
        %s361 = smul.u32 64, %s22
        %s362 = smul.u32 4, %s22
        %p363 = scmp.lt.s32.totalorder %s362, 11
        %s364 = scalar_select %p363, %s362, 11
        %s365 = scalar_lea.vmem %s1, %s364
        %s366 = smul.u32 4, %s22
        %p367 = scmp.eq.s32.totalorder %s22, 0
        // Predicated region
        $region61: #{tpu_custom_call.1} parent=59 // pred_check
          %p368 = pneg %p367
        $region62: #{tpu_custom_call.1} parent=59 // pred_check_branch
          %370 = sbr.rel (%p368) target = $region64
        $region63: #{tpu_custom_call.1} parent=59 // pred_region
          %371 = vst [vmem:[#allocation2] sm:$0xff] 0.0
          %v372 = vlaneseq
          %v373 = vshrl.u32 %v372, 7
          %374 = vst [vmem:[#allocation3] sm:$0xff] %v373
          %375 = vst [vmem:[#allocation3 + $0x8] sm:$0xff] %v373
          %376 = vst [vmem:[#allocation3 + $0x10] sm:$0xff] %v373
          %377 = vst [vmem:[#allocation3 + $0x18] sm:$0xff] %v373
          %v378 = vlaneseq
          %v379 = vand.u32 %v378, 127
          %380 = vst [vmem:[#allocation4] sm:$0xff] %v379
          %381 = vst [vmem:[#allocation4 + $0x8] sm:$0xff] %v379
          %382 = vst [vmem:[#allocation4 + $0x10] sm:$0xff] %v379
          %383 = vst [vmem:[#allocation4 + $0x18] sm:$0xff] %v379
          %384 = vst [vmem:[#allocation4 + $0x20] sm:$0xff] %v379
          %385 = vst [vmem:[#allocation4 + $0x28] sm:$0xff] %v379
          %386 = vst [vmem:[#allocation4 + $0x30] sm:$0xff] %v379
          %387 = vst [vmem:[#allocation4 + $0x38] sm:$0xff] %v379
          %388 = vst [vmem:[#allocation4 + $0x40] sm:$0xff] %v379
          %389 = vst [vmem:[#allocation4 + $0x48] sm:$0xff] %v379
          %390 = vst [vmem:[#allocation4 + $0x50] sm:$0xff] %v379
          %391 = vst [vmem:[#allocation4 + $0x58] sm:$0xff] %v379
          %392 = vst [vmem:[#allocation4 + $0x60] sm:$0xff] %v379
          %393 = vst [vmem:[#allocation4 + $0x68] sm:$0xff] %v379
          %394 = vst [vmem:[#allocation4 + $0x70] sm:$0xff] %v379
          %395 = vst [vmem:[#allocation4 + $0x78] sm:$0xff] %v379
          %396 = vst [vmem:[#allocation4 + $0x80] sm:$0xff] %v379
          %397 = vst [vmem:[#allocation4 + $0x88] sm:$0xff] %v379
          %398 = vst [vmem:[#allocation4 + $0x90] sm:$0xff] %v379
          %399 = vst [vmem:[#allocation4 + $0x98] sm:$0xff] %v379
          %400 = vst [vmem:[#allocation4 + $0xa0] sm:$0xff] %v379
          %401 = vst [vmem:[#allocation4 + $0xa8] sm:$0xff] %v379
          %402 = vst [vmem:[#allocation4 + $0xb0] sm:$0xff] %v379
          %403 = vst [vmem:[#allocation4 + $0xb8] sm:$0xff] %v379
          %404 = vst [vmem:[#allocation4 + $0xc0] sm:$0xff] %v379
          %405 = vst [vmem:[#allocation4 + $0xc8] sm:$0xff] %v379
          %406 = vst [vmem:[#allocation4 + $0xd0] sm:$0xff] %v379
          %407 = vst [vmem:[#allocation4 + $0xd8] sm:$0xff] %v379
          %408 = vst [vmem:[#allocation4 + $0xe0] sm:$0xff] %v379
          %409 = vst [vmem:[#allocation4 + $0xe8] sm:$0xff] %v379
          %410 = vst [vmem:[#allocation4 + $0xf0] sm:$0xff] %v379
          %411 = vst [vmem:[#allocation4 + $0xf8] sm:$0xff] %v379
          %412 = vst [vmem:[#allocation4 + $0x100] sm:$0xff] %v379
          %413 = vst [vmem:[#allocation4 + $0x108] sm:$0xff] %v379
          %414 = vst [vmem:[#allocation4 + $0x110] sm:$0xff] %v379
          %415 = vst [vmem:[#allocation4 + $0x118] sm:$0xff] %v379
          %416 = vst [vmem:[#allocation4 + $0x120] sm:$0xff] %v379
          %417 = vst [vmem:[#allocation4 + $0x128] sm:$0xff] %v379
          %418 = vst [vmem:[#allocation4 + $0x130] sm:$0xff] %v379
          %419 = vst [vmem:[#allocation4 + $0x138] sm:$0xff] %v379
          %420 = vst [vmem:[#allocation4 + $0x140] sm:$0xff] %v379
          %421 = vst [vmem:[#allocation4 + $0x148] sm:$0xff] %v379
          %422 = vst [vmem:[#allocation4 + $0x150] sm:$0xff] %v379
          %423 = vst [vmem:[#allocation4 + $0x158] sm:$0xff] %v379
          %424 = vst [vmem:[#allocation4 + $0x160] sm:$0xff] %v379
          %425 = vst [vmem:[#allocation4 + $0x168] sm:$0xff] %v379
          %426 = vst [vmem:[#allocation4 + $0x170] sm:$0xff] %v379
          %427 = vst [vmem:[#allocation4 + $0x178] sm:$0xff] %v379
          %428 = vst [vmem:[#allocation4 + $0x180] sm:$0xff] %v379
          %429 = vst [vmem:[#allocation4 + $0x188] sm:$0xff] %v379
          %430 = vst [vmem:[#allocation4 + $0x190] sm:$0xff] %v379
          %431 = vst [vmem:[#allocation4 + $0x198] sm:$0xff] %v379
          %432 = vst [vmem:[#allocation4 + $0x1a0] sm:$0xff] %v379
          %433 = vst [vmem:[#allocation4 + $0x1a8] sm:$0xff] %v379
          %434 = vst [vmem:[#allocation4 + $0x1b0] sm:$0xff] %v379
          %435 = vst [vmem:[#allocation4 + $0x1b8] sm:$0xff] %v379
          %436 = vst [vmem:[#allocation4 + $0x1c0] sm:$0xff] %v379
          %437 = vst [vmem:[#allocation4 + $0x1c8] sm:$0xff] %v379
          %438 = vst [vmem:[#allocation4 + $0x1d0] sm:$0xff] %v379
          %439 = vst [vmem:[#allocation4 + $0x1d8] sm:$0xff] %v379
          %440 = vst [vmem:[#allocation4 + $0x1e0] sm:$0xff] %v379
          %441 = vst [vmem:[#allocation4 + $0x1e8] sm:$0xff] %v379
          %442 = vst [vmem:[#allocation4 + $0x1f0] sm:$0xff] %v379
          %443 = vst [vmem:[#allocation4 + $0x1f8] sm:$0xff] %v379
        $region64: #{tpu_custom_call.1} parent=59 // pred_fallthru
          _
        %v444 = vld [vmem:[%s365] sm:$0xf]
        %v445 = vld [vmem:[#allocation3] sm:$0xff]
        %v446 = vld [vmem:[#allocation3 + $0x8] sm:$0xff]
        %v447 = vld [vmem:[#allocation3 + $0x10] sm:$0xff]
        %v448 = vld [vmem:[#allocation3 + $0x18] sm:$0xff]
        %v449 = vlaneseq
        %v450 = vshrl.u32 %v449, 7
        %v451 = vsub.s32 0, %v450
        %v452 = vrot.slane %v444, %v451
        %v453 = vlaneseq
        %v454 = vshrl.u32 %v453, 7
        %v455 = vsub.s32 1, %v454
        %v456 = vrot.slane %v444, %v455
        %v457 = vlaneseq
        %v458 = vshrl.u32 %v457, 7
        %v459 = vsub.s32 2, %v458
        %v460 = vrot.slane %v444, %v459
        %v461 = vlaneseq
        %v462 = vshrl.u32 %v461, 7
        %v463 = vsub.s32 3, %v462
        %v464 = vrot.slane %v444, %v463
        %vm465 = vcmp.eq.s32.totalorder %v452, %v445
        %vm466 = vcmp.eq.s32.totalorder %v456, %v446
        %vm467 = vcmp.eq.s32.totalorder %v460, %v447
        %vm468 = vcmp.eq.s32.totalorder %v464, %v448
        %v469 = vsel %vm465, 1, 0
        %v470 = vsel %vm466, 1, 0
        %v471 = vsel %vm467, 1, 0
        %v472 = vsel %vm468, 1, 0
        %v473 = vcvt.s32.f32 %v469
        %v474 = vcvt.s32.f32 %v470
        %v475 = vcvt.s32.f32 %v471
        %v476 = vcvt.s32.f32 %v472
        %v477 = vld [vmem:[%s360] sm:$0xff]
        %v478 = vld [vmem:[%s360 + $0x8] sm:$0xff]
        %v479 = vld [vmem:[%s360 + $0x10] sm:$0xff]
        %v480 = vld [vmem:[%s360 + $0x18] sm:$0xff]
        %v481 = vld [vmem:[%s360 + $0x20] sm:$0xff]
        %v482 = vld [vmem:[%s360 + $0x28] sm:$0xff]
        %v483 = vld [vmem:[%s360 + $0x30] sm:$0xff]
        %v484 = vld [vmem:[%s360 + $0x38] sm:$0xff]
        %v485 = vld [vmem:[%s360 + $0x40] sm:$0xff]
        %v486 = vld [vmem:[%s360 + $0x48] sm:$0xff]
        %v487 = vld [vmem:[%s360 + $0x50] sm:$0xff]
        %v488 = vld [vmem:[%s360 + $0x58] sm:$0xff]
        %v489 = vld [vmem:[%s360 + $0x60] sm:$0xff]
        %v490 = vld [vmem:[%s360 + $0x68] sm:$0xff]
        %v491 = vld [vmem:[%s360 + $0x70] sm:$0xff]
        %v492 = vld [vmem:[%s360 + $0x78] sm:$0xff]
        %v493 = vld [vmem:[%s360 + $0x80] sm:$0xff]
        %v494 = vld [vmem:[%s360 + $0x88] sm:$0xff]
        %v495 = vld [vmem:[%s360 + $0x90] sm:$0xff]
        %v496 = vld [vmem:[%s360 + $0x98] sm:$0xff]
        %v497 = vld [vmem:[%s360 + $0xa0] sm:$0xff]
        %v498 = vld [vmem:[%s360 + $0xa8] sm:$0xff]
        %v499 = vld [vmem:[%s360 + $0xb0] sm:$0xff]
        %v500 = vld [vmem:[%s360 + $0xb8] sm:$0xff]
        %v501 = vld [vmem:[%s360 + $0xc0] sm:$0xff]
        %v502 = vld [vmem:[%s360 + $0xc8] sm:$0xff]
        %v503 = vld [vmem:[%s360 + $0xd0] sm:$0xff]
        %v504 = vld [vmem:[%s360 + $0xd8] sm:$0xff]
        %v505 = vld [vmem:[%s360 + $0xe0] sm:$0xff]
        %v506 = vld [vmem:[%s360 + $0xe8] sm:$0xff]
        %v507 = vld [vmem:[%s360 + $0xf0] sm:$0xff]
        %v508 = vld [vmem:[%s360 + $0xf8] sm:$0xff]
        %v509 = vld [vmem:[%s360 + $0x100] sm:$0xff]
        %v510 = vld [vmem:[%s360 + $0x108] sm:$0xff]
        %v511 = vld [vmem:[%s360 + $0x110] sm:$0xff]
        %v512 = vld [vmem:[%s360 + $0x118] sm:$0xff]
        %v513 = vld [vmem:[%s360 + $0x120] sm:$0xff]
        %v514 = vld [vmem:[%s360 + $0x128] sm:$0xff]
        %v515 = vld [vmem:[%s360 + $0x130] sm:$0xff]
        %v516 = vld [vmem:[%s360 + $0x138] sm:$0xff]
        %v517 = vld [vmem:[%s360 + $0x140] sm:$0xff]
        %v518 = vld [vmem:[%s360 + $0x148] sm:$0xff]
        %v519 = vld [vmem:[%s360 + $0x150] sm:$0xff]
        %v520 = vld [vmem:[%s360 + $0x158] sm:$0xff]
        %v521 = vld [vmem:[%s360 + $0x160] sm:$0xff]
        %v522 = vld [vmem:[%s360 + $0x168] sm:$0xff]
        %v523 = vld [vmem:[%s360 + $0x170] sm:$0xff]
        %v524 = vld [vmem:[%s360 + $0x178] sm:$0xff]
        %v525 = vld [vmem:[%s360 + $0x180] sm:$0xff]
        %v526 = vld [vmem:[%s360 + $0x188] sm:$0xff]
        %v527 = vld [vmem:[%s360 + $0x190] sm:$0xff]
        %v528 = vld [vmem:[%s360 + $0x198] sm:$0xff]
        %v529 = vld [vmem:[%s360 + $0x1a0] sm:$0xff]
        %v530 = vld [vmem:[%s360 + $0x1a8] sm:$0xff]
        %v531 = vld [vmem:[%s360 + $0x1b0] sm:$0xff]
        %v532 = vld [vmem:[%s360 + $0x1b8] sm:$0xff]
        %v533 = vld [vmem:[%s360 + $0x1c0] sm:$0xff]
        %v534 = vld [vmem:[%s360 + $0x1c8] sm:$0xff]
        %v535 = vld [vmem:[%s360 + $0x1d0] sm:$0xff]
        %v536 = vld [vmem:[%s360 + $0x1d8] sm:$0xff]
        %v537 = vld [vmem:[%s360 + $0x1e0] sm:$0xff]
        %v538 = vld [vmem:[%s360 + $0x1e8] sm:$0xff]
        %v539 = vld [vmem:[%s360 + $0x1f0] sm:$0xff]
        %v540 = vld [vmem:[%s360 + $0x1f8] sm:$0xff]
        %v541 = vld [vmem:[#allocation4] sm:$0xff]
        %v542 = vld [vmem:[#allocation4 + $0x8] sm:$0xff]
        %v543 = vld [vmem:[#allocation4 + $0x10] sm:$0xff]
        %v544 = vld [vmem:[#allocation4 + $0x18] sm:$0xff]
        %v545 = vld [vmem:[#allocation4 + $0x20] sm:$0xff]
        %v546 = vld [vmem:[#allocation4 + $0x28] sm:$0xff]
        %v547 = vld [vmem:[#allocation4 + $0x30] sm:$0xff]
        %v548 = vld [vmem:[#allocation4 + $0x38] sm:$0xff]
        %v549 = vld [vmem:[#allocation4 + $0x40] sm:$0xff]
        %v550 = vld [vmem:[#allocation4 + $0x48] sm:$0xff]
        %v551 = vld [vmem:[#allocation4 + $0x50] sm:$0xff]
        %v552 = vld [vmem:[#allocation4 + $0x58] sm:$0xff]
        %v553 = vld [vmem:[#allocation4 + $0x60] sm:$0xff]
        %v554 = vld [vmem:[#allocation4 + $0x68] sm:$0xff]
        %v555 = vld [vmem:[#allocation4 + $0x70] sm:$0xff]
        %v556 = vld [vmem:[#allocation4 + $0x78] sm:$0xff]
        %v557 = vld [vmem:[#allocation4 + $0x80] sm:$0xff]
        %v558 = vld [vmem:[#allocation4 + $0x88] sm:$0xff]
        %v559 = vld [vmem:[#allocation4 + $0x90] sm:$0xff]
        %v560 = vld [vmem:[#allocation4 + $0x98] sm:$0xff]
        %v561 = vld [vmem:[#allocation4 + $0xa0] sm:$0xff]
        %v562 = vld [vmem:[#allocation4 + $0xa8] sm:$0xff]
        %v563 = vld [vmem:[#allocation4 + $0xb0] sm:$0xff]
        %v564 = vld [vmem:[#allocation4 + $0xb8] sm:$0xff]
        %v565 = vld [vmem:[#allocation4 + $0xc0] sm:$0xff]
        %v566 = vld [vmem:[#allocation4 + $0xc8] sm:$0xff]
        %v567 = vld [vmem:[#allocation4 + $0xd0] sm:$0xff]
        %v568 = vld [vmem:[#allocation4 + $0xd8] sm:$0xff]
        %v569 = vld [vmem:[#allocation4 + $0xe0] sm:$0xff]
        %v570 = vld [vmem:[#allocation4 + $0xe8] sm:$0xff]
        %v571 = vld [vmem:[#allocation4 + $0xf0] sm:$0xff]
        %v572 = vld [vmem:[#allocation4 + $0xf8] sm:$0xff]
        %v573 = vld [vmem:[#allocation4 + $0x100] sm:$0xff]
        %v574 = vld [vmem:[#allocation4 + $0x108] sm:$0xff]
        %v575 = vld [vmem:[#allocation4 + $0x110] sm:$0xff]
        %v576 = vld [vmem:[#allocation4 + $0x118] sm:$0xff]
        %v577 = vld [vmem:[#allocation4 + $0x120] sm:$0xff]
        %v578 = vld [vmem:[#allocation4 + $0x128] sm:$0xff]
        %v579 = vld [vmem:[#allocation4 + $0x130] sm:$0xff]
        %v580 = vld [vmem:[#allocation4 + $0x138] sm:$0xff]
        %v581 = vld [vmem:[#allocation4 + $0x140] sm:$0xff]
        %v582 = vld [vmem:[#allocation4 + $0x148] sm:$0xff]
        %v583 = vld [vmem:[#allocation4 + $0x150] sm:$0xff]
        %v584 = vld [vmem:[#allocation4 + $0x158] sm:$0xff]
        %v585 = vld [vmem:[#allocation4 + $0x160] sm:$0xff]
        %v586 = vld [vmem:[#allocation4 + $0x168] sm:$0xff]
        %v587 = vld [vmem:[#allocation4 + $0x170] sm:$0xff]
        %v588 = vld [vmem:[#allocation4 + $0x178] sm:$0xff]
        %v589 = vld [vmem:[#allocation4 + $0x180] sm:$0xff]
        %v590 = vld [vmem:[#allocation4 + $0x188] sm:$0xff]
        %v591 = vld [vmem:[#allocation4 + $0x190] sm:$0xff]
        %v592 = vld [vmem:[#allocation4 + $0x198] sm:$0xff]
        %v593 = vld [vmem:[#allocation4 + $0x1a0] sm:$0xff]
        %v594 = vld [vmem:[#allocation4 + $0x1a8] sm:$0xff]
        %v595 = vld [vmem:[#allocation4 + $0x1b0] sm:$0xff]
        %v596 = vld [vmem:[#allocation4 + $0x1b8] sm:$0xff]
        %v597 = vld [vmem:[#allocation4 + $0x1c0] sm:$0xff]
        %v598 = vld [vmem:[#allocation4 + $0x1c8] sm:$0xff]
        %v599 = vld [vmem:[#allocation4 + $0x1d0] sm:$0xff]
        %v600 = vld [vmem:[#allocation4 + $0x1d8] sm:$0xff]
        %v601 = vld [vmem:[#allocation4 + $0x1e0] sm:$0xff]
        %v602 = vld [vmem:[#allocation4 + $0x1e8] sm:$0xff]
        %v603 = vld [vmem:[#allocation4 + $0x1f0] sm:$0xff]
        %v604 = vld [vmem:[#allocation4 + $0x1f8] sm:$0xff]
        %605 = vset.pattern.permute.xlu0 0
        %606 = vperm.xlu0 %605, %v477
        %v607 = vpop.permute.xlu0 %606
        %608 = vset.pattern.permute.xlu0 0
        %609 = vperm.xlu0 %608, %v478
        %v610 = vpop.permute.xlu0 %609
        %611 = vset.pattern.permute.xlu0 0
        %612 = vperm.xlu0 %611, %v479
        %v613 = vpop.permute.xlu0 %612
        %614 = vset.pattern.permute.xlu0 0
        %615 = vperm.xlu0 %614, %v480
        %v616 = vpop.permute.xlu0 %615
        %617 = vset.pattern.permute.xlu0 0
        %618 = vperm.xlu0 %617, %v481
        %v619 = vpop.permute.xlu0 %618
        %620 = vset.pattern.permute.xlu0 0
        %621 = vperm.xlu0 %620, %v482
        %v622 = vpop.permute.xlu0 %621
        %623 = vset.pattern.permute.xlu0 0
        %624 = vperm.xlu0 %623, %v483
        %v625 = vpop.permute.xlu0 %624
        %626 = vset.pattern.permute.xlu0 0
        %627 = vperm.xlu0 %626, %v484
        %v628 = vpop.permute.xlu0 %627
        %629 = vset.pattern.permute.xlu0 0
        %630 = vperm.xlu0 %629, %v485
        %v631 = vpop.permute.xlu0 %630
        %632 = vset.pattern.permute.xlu0 0
        %633 = vperm.xlu0 %632, %v486
        %v634 = vpop.permute.xlu0 %633
        %635 = vset.pattern.permute.xlu0 0
        %636 = vperm.xlu0 %635, %v487
        %v637 = vpop.permute.xlu0 %636
        %638 = vset.pattern.permute.xlu0 0
        %639 = vperm.xlu0 %638, %v488
        %v640 = vpop.permute.xlu0 %639
        %641 = vset.pattern.permute.xlu0 0
        %642 = vperm.xlu0 %641, %v489
        %v643 = vpop.permute.xlu0 %642
        %644 = vset.pattern.permute.xlu0 0
        %645 = vperm.xlu0 %644, %v490
        %v646 = vpop.permute.xlu0 %645
        %647 = vset.pattern.permute.xlu0 0
        %648 = vperm.xlu0 %647, %v491
        %v649 = vpop.permute.xlu0 %648
        %650 = vset.pattern.permute.xlu0 0
        %651 = vperm.xlu0 %650, %v492
        %v652 = vpop.permute.xlu0 %651
        %653 = vset.pattern.permute.xlu0 0
        %654 = vperm.xlu0 %653, %v493
        %v655 = vpop.permute.xlu0 %654
        %656 = vset.pattern.permute.xlu0 0
        %657 = vperm.xlu0 %656, %v494
        %v658 = vpop.permute.xlu0 %657
        %659 = vset.pattern.permute.xlu0 0
        %660 = vperm.xlu0 %659, %v495
        %v661 = vpop.permute.xlu0 %660
        %662 = vset.pattern.permute.xlu0 0
        %663 = vperm.xlu0 %662, %v496
        %v664 = vpop.permute.xlu0 %663
        %665 = vset.pattern.permute.xlu0 0
        %666 = vperm.xlu0 %665, %v497
        %v667 = vpop.permute.xlu0 %666
        %668 = vset.pattern.permute.xlu0 0
        %669 = vperm.xlu0 %668, %v498
        %v670 = vpop.permute.xlu0 %669
        %671 = vset.pattern.permute.xlu0 0
        %672 = vperm.xlu0 %671, %v499
        %v673 = vpop.permute.xlu0 %672
        %674 = vset.pattern.permute.xlu0 0
        %675 = vperm.xlu0 %674, %v500
        %v676 = vpop.permute.xlu0 %675
        %677 = vset.pattern.permute.xlu0 0
        %678 = vperm.xlu0 %677, %v501
        %v679 = vpop.permute.xlu0 %678
        %680 = vset.pattern.permute.xlu0 0
        %681 = vperm.xlu0 %680, %v502
        %v682 = vpop.permute.xlu0 %681
        %683 = vset.pattern.permute.xlu0 0
        %684 = vperm.xlu0 %683, %v503
        %v685 = vpop.permute.xlu0 %684
        %686 = vset.pattern.permute.xlu0 0
        %687 = vperm.xlu0 %686, %v504
        %v688 = vpop.permute.xlu0 %687
        %689 = vset.pattern.permute.xlu0 0
        %690 = vperm.xlu0 %689, %v505
        %v691 = vpop.permute.xlu0 %690
        %692 = vset.pattern.permute.xlu0 0
        %693 = vperm.xlu0 %692, %v506
        %v694 = vpop.permute.xlu0 %693
        %695 = vset.pattern.permute.xlu0 0
        %696 = vperm.xlu0 %695, %v507
        %v697 = vpop.permute.xlu0 %696
        %698 = vset.pattern.permute.xlu0 0
        %699 = vperm.xlu0 %698, %v508
        %v700 = vpop.permute.xlu0 %699
        %701 = vset.pattern.permute.xlu0 0
        %702 = vperm.xlu0 %701, %v509
        %v703 = vpop.permute.xlu0 %702
        %704 = vset.pattern.permute.xlu0 0
        %705 = vperm.xlu0 %704, %v510
        %v706 = vpop.permute.xlu0 %705
        %707 = vset.pattern.permute.xlu0 0
        %708 = vperm.xlu0 %707, %v511
        %v709 = vpop.permute.xlu0 %708
        %710 = vset.pattern.permute.xlu0 0
        %711 = vperm.xlu0 %710, %v512
        %v712 = vpop.permute.xlu0 %711
        %713 = vset.pattern.permute.xlu0 0
        %714 = vperm.xlu0 %713, %v513
        %v715 = vpop.permute.xlu0 %714
        %716 = vset.pattern.permute.xlu0 0
        %717 = vperm.xlu0 %716, %v514
        %v718 = vpop.permute.xlu0 %717
        %719 = vset.pattern.permute.xlu0 0
        %720 = vperm.xlu0 %719, %v515
        %v721 = vpop.permute.xlu0 %720
        %722 = vset.pattern.permute.xlu0 0
        %723 = vperm.xlu0 %722, %v516
        %v724 = vpop.permute.xlu0 %723
        %725 = vset.pattern.permute.xlu0 0
        %726 = vperm.xlu0 %725, %v517
        %v727 = vpop.permute.xlu0 %726
        %728 = vset.pattern.permute.xlu0 0
        %729 = vperm.xlu0 %728, %v518
        %v730 = vpop.permute.xlu0 %729
        %731 = vset.pattern.permute.xlu0 0
        %732 = vperm.xlu0 %731, %v519
        %v733 = vpop.permute.xlu0 %732
        %734 = vset.pattern.permute.xlu0 0
        %735 = vperm.xlu0 %734, %v520
        %v736 = vpop.permute.xlu0 %735
        %737 = vset.pattern.permute.xlu0 0
        %738 = vperm.xlu0 %737, %v521
        %v739 = vpop.permute.xlu0 %738
        %740 = vset.pattern.permute.xlu0 0
        %741 = vperm.xlu0 %740, %v522
        %v742 = vpop.permute.xlu0 %741
        %743 = vset.pattern.permute.xlu0 0
        %744 = vperm.xlu0 %743, %v523
        %v745 = vpop.permute.xlu0 %744
        %746 = vset.pattern.permute.xlu0 0
        %747 = vperm.xlu0 %746, %v524
        %v748 = vpop.permute.xlu0 %747
        %749 = vset.pattern.permute.xlu0 0
        %750 = vperm.xlu0 %749, %v525
        %v751 = vpop.permute.xlu0 %750
        %752 = vset.pattern.permute.xlu0 0
        %753 = vperm.xlu0 %752, %v526
        %v754 = vpop.permute.xlu0 %753
        %755 = vset.pattern.permute.xlu0 0
        %756 = vperm.xlu0 %755, %v527
        %v757 = vpop.permute.xlu0 %756
        %758 = vset.pattern.permute.xlu0 0
        %759 = vperm.xlu0 %758, %v528
        %v760 = vpop.permute.xlu0 %759
        %761 = vset.pattern.permute.xlu0 0
        %762 = vperm.xlu0 %761, %v529
        %v763 = vpop.permute.xlu0 %762
        %764 = vset.pattern.permute.xlu0 0
        %765 = vperm.xlu0 %764, %v530
        %v766 = vpop.permute.xlu0 %765
        %767 = vset.pattern.permute.xlu0 0
        %768 = vperm.xlu0 %767, %v531
        %v769 = vpop.permute.xlu0 %768
        %770 = vset.pattern.permute.xlu0 0
        %771 = vperm.xlu0 %770, %v532
        %v772 = vpop.permute.xlu0 %771
        %773 = vset.pattern.permute.xlu0 0
        %774 = vperm.xlu0 %773, %v533
        %v775 = vpop.permute.xlu0 %774
        %776 = vset.pattern.permute.xlu0 0
        %777 = vperm.xlu0 %776, %v534
        %v778 = vpop.permute.xlu0 %777
        %779 = vset.pattern.permute.xlu0 0
        %780 = vperm.xlu0 %779, %v535
        %v781 = vpop.permute.xlu0 %780
        %782 = vset.pattern.permute.xlu0 0
        %783 = vperm.xlu0 %782, %v536
        %v784 = vpop.permute.xlu0 %783
        %785 = vset.pattern.permute.xlu0 0
        %786 = vperm.xlu0 %785, %v537
        %v787 = vpop.permute.xlu0 %786
        %788 = vset.pattern.permute.xlu0 0
        %789 = vperm.xlu0 %788, %v538
        %v790 = vpop.permute.xlu0 %789
        %791 = vset.pattern.permute.xlu0 0
        %792 = vperm.xlu0 %791, %v539
        %v793 = vpop.permute.xlu0 %792
        %794 = vset.pattern.permute.xlu0 0
        %795 = vperm.xlu0 %794, %v540
        %v796 = vpop.permute.xlu0 %795
        %vm797 = vcmp.eq.s32.totalorder %v607, %v541
        %vm798 = vcmp.eq.s32.totalorder %v610, %v542
        %vm799 = vcmp.eq.s32.totalorder %v613, %v543
        %vm800 = vcmp.eq.s32.totalorder %v616, %v544
        %vm801 = vcmp.eq.s32.totalorder %v619, %v545
        %vm802 = vcmp.eq.s32.totalorder %v622, %v546
        %vm803 = vcmp.eq.s32.totalorder %v625, %v547
        %vm804 = vcmp.eq.s32.totalorder %v628, %v548
        %vm805 = vcmp.eq.s32.totalorder %v631, %v549
        %vm806 = vcmp.eq.s32.totalorder %v634, %v550
        %vm807 = vcmp.eq.s32.totalorder %v637, %v551
        %vm808 = vcmp.eq.s32.totalorder %v640, %v552
        %vm809 = vcmp.eq.s32.totalorder %v643, %v553
        %vm810 = vcmp.eq.s32.totalorder %v646, %v554
        %vm811 = vcmp.eq.s32.totalorder %v649, %v555
        %vm812 = vcmp.eq.s32.totalorder %v652, %v556
        %vm813 = vcmp.eq.s32.totalorder %v655, %v557
        %vm814 = vcmp.eq.s32.totalorder %v658, %v558
        %vm815 = vcmp.eq.s32.totalorder %v661, %v559
        %vm816 = vcmp.eq.s32.totalorder %v664, %v560
        %vm817 = vcmp.eq.s32.totalorder %v667, %v561
        %vm818 = vcmp.eq.s32.totalorder %v670, %v562
        %vm819 = vcmp.eq.s32.totalorder %v673, %v563
        %vm820 = vcmp.eq.s32.totalorder %v676, %v564
        %vm821 = vcmp.eq.s32.totalorder %v679, %v565
        %vm822 = vcmp.eq.s32.totalorder %v682, %v566
        %vm823 = vcmp.eq.s32.totalorder %v685, %v567
        %vm824 = vcmp.eq.s32.totalorder %v688, %v568
        %vm825 = vcmp.eq.s32.totalorder %v691, %v569
        %vm826 = vcmp.eq.s32.totalorder %v694, %v570
        %vm827 = vcmp.eq.s32.totalorder %v697, %v571
        %vm828 = vcmp.eq.s32.totalorder %v700, %v572
        %vm829 = vcmp.eq.s32.totalorder %v703, %v573
        %vm830 = vcmp.eq.s32.totalorder %v706, %v574
        %vm831 = vcmp.eq.s32.totalorder %v709, %v575
        %vm832 = vcmp.eq.s32.totalorder %v712, %v576
        %vm833 = vcmp.eq.s32.totalorder %v715, %v577
        %vm834 = vcmp.eq.s32.totalorder %v718, %v578
        %vm835 = vcmp.eq.s32.totalorder %v721, %v579
        %vm836 = vcmp.eq.s32.totalorder %v724, %v580
        %vm837 = vcmp.eq.s32.totalorder %v727, %v581
        %vm838 = vcmp.eq.s32.totalorder %v730, %v582
        %vm839 = vcmp.eq.s32.totalorder %v733, %v583
        %vm840 = vcmp.eq.s32.totalorder %v736, %v584
        %vm841 = vcmp.eq.s32.totalorder %v739, %v585
        %vm842 = vcmp.eq.s32.totalorder %v742, %v586
        %vm843 = vcmp.eq.s32.totalorder %v745, %v587
        %vm844 = vcmp.eq.s32.totalorder %v748, %v588
        %vm845 = vcmp.eq.s32.totalorder %v751, %v589
        %vm846 = vcmp.eq.s32.totalorder %v754, %v590
        %vm847 = vcmp.eq.s32.totalorder %v757, %v591
        %vm848 = vcmp.eq.s32.totalorder %v760, %v592
        %vm849 = vcmp.eq.s32.totalorder %v763, %v593
        %vm850 = vcmp.eq.s32.totalorder %v766, %v594
        %vm851 = vcmp.eq.s32.totalorder %v769, %v595
        %vm852 = vcmp.eq.s32.totalorder %v772, %v596
        %vm853 = vcmp.eq.s32.totalorder %v775, %v597
        %vm854 = vcmp.eq.s32.totalorder %v778, %v598
        %vm855 = vcmp.eq.s32.totalorder %v781, %v599
        %vm856 = vcmp.eq.s32.totalorder %v784, %v600
        %vm857 = vcmp.eq.s32.totalorder %v787, %v601
        %vm858 = vcmp.eq.s32.totalorder %v790, %v602
        %vm859 = vcmp.eq.s32.totalorder %v793, %v603
        %vm860 = vcmp.eq.s32.totalorder %v796, %v604
        %v861 = vsel %vm797, 1, 0
        %v862 = vsel %vm798, 1, 0
        %v863 = vsel %vm799, 1, 0
        %v864 = vsel %vm800, 1, 0
        %v865 = vsel %vm801, 1, 0
        %v866 = vsel %vm802, 1, 0
        %v867 = vsel %vm803, 1, 0
        %v868 = vsel %vm804, 1, 0
        %v869 = vsel %vm805, 1, 0
        %v870 = vsel %vm806, 1, 0
        %v871 = vsel %vm807, 1, 0
        %v872 = vsel %vm808, 1, 0
        %v873 = vsel %vm809, 1, 0
        %v874 = vsel %vm810, 1, 0
        %v875 = vsel %vm811, 1, 0
        %v876 = vsel %vm812, 1, 0
        %v877 = vsel %vm813, 1, 0
        %v878 = vsel %vm814, 1, 0
        %v879 = vsel %vm815, 1, 0
        %v880 = vsel %vm816, 1, 0
        %v881 = vsel %vm817, 1, 0
        %v882 = vsel %vm818, 1, 0
        %v883 = vsel %vm819, 1, 0
        %v884 = vsel %vm820, 1, 0
        %v885 = vsel %vm821, 1, 0
        %v886 = vsel %vm822, 1, 0
        %v887 = vsel %vm823, 1, 0
        %v888 = vsel %vm824, 1, 0
        %v889 = vsel %vm825, 1, 0
        %v890 = vsel %vm826, 1, 0
        %v891 = vsel %vm827, 1, 0
        %v892 = vsel %vm828, 1, 0
        %v893 = vsel %vm829, 1, 0
        %v894 = vsel %vm830, 1, 0
        %v895 = vsel %vm831, 1, 0
        %v896 = vsel %vm832, 1, 0
        %v897 = vsel %vm833, 1, 0
        %v898 = vsel %vm834, 1, 0
        %v899 = vsel %vm835, 1, 0
        %v900 = vsel %vm836, 1, 0
        %v901 = vsel %vm837, 1, 0
        %v902 = vsel %vm838, 1, 0
        %v903 = vsel %vm839, 1, 0
        %v904 = vsel %vm840, 1, 0
        %v905 = vsel %vm841, 1, 0
        %v906 = vsel %vm842, 1, 0
        %v907 = vsel %vm843, 1, 0
        %v908 = vsel %vm844, 1, 0
        %v909 = vsel %vm845, 1, 0
        %v910 = vsel %vm846, 1, 0
        %v911 = vsel %vm847, 1, 0
        %v912 = vsel %vm848, 1, 0
        %v913 = vsel %vm849, 1, 0
        %v914 = vsel %vm850, 1, 0
        %v915 = vsel %vm851, 1, 0
        %v916 = vsel %vm852, 1, 0
        %v917 = vsel %vm853, 1, 0
        %v918 = vsel %vm854, 1, 0
        %v919 = vsel %vm855, 1, 0
        %v920 = vsel %vm856, 1, 0
        %v921 = vsel %vm857, 1, 0
        %v922 = vsel %vm858, 1, 0
        %v923 = vsel %vm859, 1, 0
        %v924 = vsel %vm860, 1, 0
        %v925 = vcvt.s32.f32 %v861
        %v926 = vcvt.s32.f32 %v862
        %v927 = vcvt.s32.f32 %v863
        %v928 = vcvt.s32.f32 %v864
        %v929 = vcvt.s32.f32 %v865
        %v930 = vcvt.s32.f32 %v866
        %v931 = vcvt.s32.f32 %v867
        %v932 = vcvt.s32.f32 %v868
        %v933 = vcvt.s32.f32 %v869
        %v934 = vcvt.s32.f32 %v870
        %v935 = vcvt.s32.f32 %v871
        %v936 = vcvt.s32.f32 %v872
        %v937 = vcvt.s32.f32 %v873
        %v938 = vcvt.s32.f32 %v874
        %v939 = vcvt.s32.f32 %v875
        %v940 = vcvt.s32.f32 %v876
        %v941 = vcvt.s32.f32 %v877
        %v942 = vcvt.s32.f32 %v878
        %v943 = vcvt.s32.f32 %v879
        %v944 = vcvt.s32.f32 %v880
        %v945 = vcvt.s32.f32 %v881
        %v946 = vcvt.s32.f32 %v882
        %v947 = vcvt.s32.f32 %v883
        %v948 = vcvt.s32.f32 %v884
        %v949 = vcvt.s32.f32 %v885
        %v950 = vcvt.s32.f32 %v886
        %v951 = vcvt.s32.f32 %v887
        %v952 = vcvt.s32.f32 %v888
        %v953 = vcvt.s32.f32 %v889
        %v954 = vcvt.s32.f32 %v890
        %v955 = vcvt.s32.f32 %v891
        %v956 = vcvt.s32.f32 %v892
        %v957 = vcvt.s32.f32 %v893
        %v958 = vcvt.s32.f32 %v894
        %v959 = vcvt.s32.f32 %v895
        %v960 = vcvt.s32.f32 %v896
        %v961 = vcvt.s32.f32 %v897
        %v962 = vcvt.s32.f32 %v898
        %v963 = vcvt.s32.f32 %v899
        %v964 = vcvt.s32.f32 %v900
        %v965 = vcvt.s32.f32 %v901
        %v966 = vcvt.s32.f32 %v902
        %v967 = vcvt.s32.f32 %v903
        %v968 = vcvt.s32.f32 %v904
        %v969 = vcvt.s32.f32 %v905
        %v970 = vcvt.s32.f32 %v906
        %v971 = vcvt.s32.f32 %v907
        %v972 = vcvt.s32.f32 %v908
        %v973 = vcvt.s32.f32 %v909
        %v974 = vcvt.s32.f32 %v910
        %v975 = vcvt.s32.f32 %v911
        %v976 = vcvt.s32.f32 %v912
        %v977 = vcvt.s32.f32 %v913
        %v978 = vcvt.s32.f32 %v914
        %v979 = vcvt.s32.f32 %v915
        %v980 = vcvt.s32.f32 %v916
        %v981 = vcvt.s32.f32 %v917
        %v982 = vcvt.s32.f32 %v918
        %v983 = vcvt.s32.f32 %v919
        %v984 = vcvt.s32.f32 %v920
        %v985 = vcvt.s32.f32 %v921
        %v986 = vcvt.s32.f32 %v922
        %v987 = vcvt.s32.f32 %v923
        %v988 = vcvt.s32.f32 %v924
        %v989 = vld [vmem:[#allocation2] sm:$0xff]
        %990 = vmatprep.subr.mxu0 0.0
        %991 = vmatpush1.msra.mxu0 %v940
        %992 = vmatprep.subr.mxu0 0.0
        %993 = vmatpush1.msra.mxu0 %v939
        %994 = vmatprep.subr.mxu0 0.0
        %995 = vmatpush1.msra.mxu0 %v938
        %996 = vmatprep.subr.mxu0 0.0
        %997 = vmatpush1.msra.mxu0 %v937
        %998 = vmatprep.subr.mxu0 0.0
        %999 = vmatpush1.msra.mxu0 %v936
        %1000 = vmatprep.subr.mxu0 0.0
        %1001 = vmatpush1.msra.mxu0 %v935
        %1002 = vmatprep.subr.mxu0 0.0
        %1003 = vmatpush1.msra.mxu0 %v934
        %1004 = vmatprep.subr.mxu0 0.0
        %1005 = vmatpush1.msra.mxu0 %v933
        %1006 = vmatprep.subr.mxu0 0.0
        %1007 = vmatpush1.msra.mxu0 %v932
        %1008 = vmatprep.subr.mxu0 0.0
        %1009 = vmatpush1.msra.mxu0 %v931
        %1010 = vmatprep.subr.mxu0 0.0
        %1011 = vmatpush1.msra.mxu0 %v930
        %1012 = vmatprep.subr.mxu0 0.0
        %1013 = vmatpush1.msra.mxu0 %v929
        %1014 = vmatprep.subr.mxu0 0.0
        %1015 = vmatpush1.msra.mxu0 %v928
        %1016 = vmatprep.subr.mxu0 0.0
        %1017 = vmatpush1.msra.mxu0 %v927
        %1018 = vmatprep.subr.mxu0 0.0
        %1019 = vmatpush1.msra.mxu0 %v926
        %1020 = vmatprep.subr.mxu0 0.0
        %1021 = vmatpush1.msra.mxu0 %v925
        %1022 = vmatprep.subr.mxu0 0.0
        %1023 = vmatpush2.msra.mxu0 %v956
        %1024 = vmatprep.subr.mxu0 0.0
        %1025 = vmatpush2.msra.mxu0 %v955
        %1026 = vmatprep.subr.mxu0 0.0
        %1027 = vmatpush2.msra.mxu0 %v954
        %1028 = vmatprep.subr.mxu0 0.0
        %1029 = vmatpush2.msra.mxu0 %v953
        %1030 = vmatprep.subr.mxu0 0.0
        %1031 = vmatpush2.msra.mxu0 %v952
        %1032 = vmatprep.subr.mxu0 0.0
        %1033 = vmatpush2.msra.mxu0 %v951
        %1034 = vmatprep.subr.mxu0 0.0
        %1035 = vmatpush2.msra.mxu0 %v950
        %1036 = vmatprep.subr.mxu0 0.0
        %1037 = vmatpush2.msra.mxu0 %v949
        %1038 = vmatprep.subr.mxu0 0.0
        %1039 = vmatpush2.msra.mxu0 %v948
        %1040 = vmatprep.subr.mxu0 0.0
        %1041 = vmatpush2.msra.mxu0 %v947
        %1042 = vmatprep.subr.mxu0 0.0
        %1043 = vmatpush2.msra.mxu0 %v946
        %1044 = vmatprep.subr.mxu0 0.0
        %1045 = vmatpush2.msra.mxu0 %v945
        %1046 = vmatprep.subr.mxu0 0.0
        %1047 = vmatpush2.msra.mxu0 %v944
        %1048 = vmatprep.subr.mxu0 0.0
        %1049 = vmatpush2.msra.mxu0 %v943
        %1050 = vmatprep.subr.mxu0 0.0
        %1051 = vmatpush2.msra.mxu0 %v942
        %1052 = vmatprep.subr.mxu0 0.0
        %1053 = vmatpush2.msra.mxu0 %v941
        %1054 = vmatprep.mubr.f32.mxu0 %v474
        %1055 = vmatmul.mubr.f32.gmra.mxu0 %v473
        %v1056 = vpop.f32.mrf.mxu0
        %v1057 = vadd.f32 0.0, %v1056
        %v1058 = vpop.f32.mrf.mxu0
        %1059 = vdwg.mxu0
        %1060 = vmatprep.subr.mxu0 0.0
        %1061 = vmatpush1.msra.mxu0 %v972
        %1062 = vmatprep.subr.mxu0 0.0
        %1063 = vmatpush1.msra.mxu0 %v971
        %1064 = vmatprep.subr.mxu0 0.0
        %1065 = vmatpush1.msra.mxu0 %v970
        %1066 = vmatprep.subr.mxu0 0.0
        %1067 = vmatpush1.msra.mxu0 %v969
        %1068 = vmatprep.subr.mxu0 0.0
        %1069 = vmatpush1.msra.mxu0 %v968
        %1070 = vmatprep.subr.mxu0 0.0
        %1071 = vmatpush1.msra.mxu0 %v967
        %1072 = vmatprep.subr.mxu0 0.0
        %1073 = vmatpush1.msra.mxu0 %v966
        %1074 = vmatprep.subr.mxu0 0.0
        %1075 = vmatpush1.msra.mxu0 %v965
        %1076 = vmatprep.subr.mxu0 0.0
        %1077 = vmatpush1.msra.mxu0 %v964
        %1078 = vmatprep.subr.mxu0 0.0
        %1079 = vmatpush1.msra.mxu0 %v963
        %1080 = vmatprep.subr.mxu0 0.0
        %1081 = vmatpush1.msra.mxu0 %v962
        %1082 = vmatprep.subr.mxu0 0.0
        %1083 = vmatpush1.msra.mxu0 %v961
        %1084 = vmatprep.subr.mxu0 0.0
        %1085 = vmatpush1.msra.mxu0 %v960
        %1086 = vmatprep.subr.mxu0 0.0
        %1087 = vmatpush1.msra.mxu0 %v959
        %1088 = vmatprep.subr.mxu0 0.0
        %1089 = vmatpush1.msra.mxu0 %v958
        %1090 = vmatprep.subr.mxu0 0.0
        %1091 = vmatpush1.msra.mxu0 %v957
        %1092 = vmatprep.subr.mxu0 0.0
        %1093 = vmatpush2.msra.mxu0 %v988
        %1094 = vmatprep.subr.mxu0 0.0
        %1095 = vmatpush2.msra.mxu0 %v987
        %1096 = vmatprep.subr.mxu0 0.0
        %1097 = vmatpush2.msra.mxu0 %v986
        %1098 = vmatprep.subr.mxu0 0.0
        %1099 = vmatpush2.msra.mxu0 %v985
        %1100 = vmatprep.subr.mxu0 0.0
        %1101 = vmatpush2.msra.mxu0 %v984
        %1102 = vmatprep.subr.mxu0 0.0
        %1103 = vmatpush2.msra.mxu0 %v983
        %1104 = vmatprep.subr.mxu0 0.0
        %1105 = vmatpush2.msra.mxu0 %v982
        %1106 = vmatprep.subr.mxu0 0.0
        %1107 = vmatpush2.msra.mxu0 %v981
        %1108 = vmatprep.subr.mxu0 0.0
        %1109 = vmatpush2.msra.mxu0 %v980
        %1110 = vmatprep.subr.mxu0 0.0
        %1111 = vmatpush2.msra.mxu0 %v979
        %1112 = vmatprep.subr.mxu0 0.0
        %1113 = vmatpush2.msra.mxu0 %v978
        %1114 = vmatprep.subr.mxu0 0.0
        %1115 = vmatpush2.msra.mxu0 %v977
        %1116 = vmatprep.subr.mxu0 0.0
        %1117 = vmatpush2.msra.mxu0 %v976
        %1118 = vmatprep.subr.mxu0 0.0
        %1119 = vmatpush2.msra.mxu0 %v975
        %1120 = vmatprep.subr.mxu0 0.0
        %1121 = vmatpush2.msra.mxu0 %v974
        %1122 = vmatprep.subr.mxu0 0.0
        %1123 = vmatpush2.msra.mxu0 %v973
        %1124 = vmatprep.mubr.f32.mxu0 %v476
        %1125 = vmatmul.mubr.f32.gmra.mxu0 %v475
        %v1126 = vpop.f32.mrf.mxu0
        %v1127 = vadd.f32 %v1057, %v1126
        %v1128 = vpop.f32.mrf.mxu0
        %1129 = vdwg.mxu0
        %v1130 = vadd.f32 %v989, %v1127
        %1131 = vst [vmem:[#allocation2] sm:$0xff] %v1130
        %p1132 = scmp.eq.s32.totalorder %s22, 2
        // Predicated region
        $region65: #{tpu_custom_call.1} parent=59 // pred_check
          %p1133 = pneg %p1132
        $region66: #{tpu_custom_call.1} parent=59 // pred_check_branch
          %1135 = sbr.rel (%p1133) target = $region68
        $region67: #{tpu_custom_call.1} parent=59 // pred_region
          %v1136 = vld [vmem:[#allocation2] sm:$0xff]
          %1137 = vadd.xlane.f32.xlu0 %v1136
          %v1138 = vpop.xlane.xlu0 %1137
          %v1139 = vld [vmem:[%s3] sm:$0xff]
          %v1140 = vld [vmem:[%s3 + $0x8] sm:$0xff]
          %v1141 = vld [vmem:[%s3 + $0x10] sm:$0xff]
          %v1142 = vld [vmem:[%s3 + $0x18] sm:$0xff]
          %v1143 = vld [vmem:[%s3 + $0x20] sm:$0xff]
          %v1144 = vld [vmem:[%s3 + $0x28] sm:$0xff]
          %v1145 = vld [vmem:[%s3 + $0x30] sm:$0xff]
          %v1146 = vld [vmem:[%s3 + $0x38] sm:$0xff]
          %v1147 = vld [vmem:[%s3 + $0x40] sm:$0xff]
          %v1148 = vld [vmem:[%s3 + $0x48] sm:$0xff]
          %v1149 = vld [vmem:[%s3 + $0x50] sm:$0xff]
          %v1150 = vld [vmem:[%s3 + $0x58] sm:$0xff]
          %v1151 = vld [vmem:[%s3 + $0x60] sm:$0xff]
          %v1152 = vld [vmem:[%s3 + $0x68] sm:$0xff]
          %v1153 = vld [vmem:[%s3 + $0x70] sm:$0xff]
          %v1154 = vld [vmem:[%s3 + $0x78] sm:$0xff]
          %1155 = vmatprep.subr.mxu0 0.0
          %1156 = vmatpush1.msra.mxu0 %v1154
          %1157 = vmatprep.subr.mxu0 0.0
          %1158 = vmatpush1.msra.mxu0 %v1153
          %1159 = vmatprep.subr.mxu0 0.0
          %1160 = vmatpush1.msra.mxu0 %v1152
          %1161 = vmatprep.subr.mxu0 0.0
          %1162 = vmatpush1.msra.mxu0 %v1151
          %1163 = vmatprep.subr.mxu0 0.0
          %1164 = vmatpush1.msra.mxu0 %v1150
          %1165 = vmatprep.subr.mxu0 0.0
          %1166 = vmatpush1.msra.mxu0 %v1149
          %1167 = vmatprep.subr.mxu0 0.0
          %1168 = vmatpush1.msra.mxu0 %v1148
          %1169 = vmatprep.subr.mxu0 0.0
          %1170 = vmatpush1.msra.mxu0 %v1147
          %1171 = vmatprep.subr.mxu0 0.0
          %1172 = vmatpush1.msra.mxu0 %v1146
          %1173 = vmatprep.subr.mxu0 0.0
          %1174 = vmatpush1.msra.mxu0 %v1145
          %1175 = vmatprep.subr.mxu0 0.0
          %1176 = vmatpush1.msra.mxu0 %v1144
          %1177 = vmatprep.subr.mxu0 0.0
          %1178 = vmatpush1.msra.mxu0 %v1143
          %1179 = vmatprep.subr.mxu0 0.0
          %1180 = vmatpush1.msra.mxu0 %v1142
          %1181 = vmatprep.subr.mxu0 0.0
          %1182 = vmatpush1.msra.mxu0 %v1141
          %1183 = vmatprep.subr.mxu0 0.0
          %1184 = vmatpush1.msra.mxu0 %v1140
          %1185 = vmatprep.subr.mxu0 0.0
          %1186 = vmatpush1.msra.mxu0 %v1139
          %1187 = vmatprep.subr.mxu0 0.0
          %1188 = vmatpush2.msra.mxu0 0.0
          %1189 = vmatprep.subr.mxu0 0.0
          %1190 = vmatpush2.msra.mxu0 0.0
          %1191 = vmatprep.subr.mxu0 0.0
          %1192 = vmatpush2.msra.mxu0 0.0
          %1193 = vmatprep.subr.mxu0 0.0
          %1194 = vmatpush2.msra.mxu0 0.0
          %1195 = vmatprep.subr.mxu0 0.0
          %1196 = vmatpush2.msra.mxu0 0.0
          %1197 = vmatprep.subr.mxu0 0.0
          %1198 = vmatpush2.msra.mxu0 0.0
          %1199 = vmatprep.subr.mxu0 0.0
          %1200 = vmatpush2.msra.mxu0 0.0
          %1201 = vmatprep.subr.mxu0 0.0
          %1202 = vmatpush2.msra.mxu0 0.0
          %1203 = vmatprep.subr.mxu0 0.0
          %1204 = vmatpush2.msra.mxu0 0.0
          %1205 = vmatprep.subr.mxu0 0.0
          %1206 = vmatpush2.msra.mxu0 0.0
          %1207 = vmatprep.subr.mxu0 0.0
          %1208 = vmatpush2.msra.mxu0 0.0
          %1209 = vmatprep.subr.mxu0 0.0
          %1210 = vmatpush2.msra.mxu0 0.0
          %1211 = vmatprep.subr.mxu0 0.0
          %1212 = vmatpush2.msra.mxu0 0.0
          %1213 = vmatprep.subr.mxu0 0.0
          %1214 = vmatpush2.msra.mxu0 0.0
          %1215 = vmatprep.subr.mxu0 0.0
          %1216 = vmatpush2.msra.mxu0 0.0
          %1217 = vmatprep.subr.mxu0 0.0
          %1218 = vmatpush2.msra.mxu0 0.0
          %1219 = vmatprep.mubr.f32.mxu0 0.0
          %1220 = vmatmul.mubr.f32.gmra.mxu0 %v1136
          %v1221 = vpop.f32.mrf.mxu0
          %v1222 = vadd.f32 0.0, %v1221
          %v1223 = vpop.f32.mrf.mxu0
          %1224 = vdwg.mxu0
          %v1225 = vmax.f32 %v1138, 1.0
          %v1226 = vrcp.pop %v1225
          %v1227 = vmul.f32 %v1222, %v1226
          %v1228 = vld [vmem:[%s2] sm:$0xff]
          %v1229 = vadd.f32 %v1227, %v1228
          %v1230 = vld [vmem:[%s4] sm:$0xff]
          %v1231 = vld [vmem:[%s4 + $0x8] sm:$0xff]
          %v1232 = vld [vmem:[%s4 + $0x10] sm:$0xff]
          %v1233 = vld [vmem:[%s4 + $0x18] sm:$0xff]
          %v1234 = vld [vmem:[%s4 + $0x20] sm:$0xff]
          %v1235 = vld [vmem:[%s4 + $0x28] sm:$0xff]
          %v1236 = vld [vmem:[%s4 + $0x30] sm:$0xff]
          %v1237 = vld [vmem:[%s4 + $0x38] sm:$0xff]
          %v1238 = vld [vmem:[%s4 + $0x40] sm:$0xff]
          %v1239 = vld [vmem:[%s4 + $0x48] sm:$0xff]
          %v1240 = vld [vmem:[%s4 + $0x50] sm:$0xff]
          %v1241 = vld [vmem:[%s4 + $0x58] sm:$0xff]
          %v1242 = vld [vmem:[%s4 + $0x60] sm:$0xff]
          %v1243 = vld [vmem:[%s4 + $0x68] sm:$0xff]
          %v1244 = vld [vmem:[%s4 + $0x70] sm:$0xff]
          %v1245 = vld [vmem:[%s4 + $0x78] sm:$0xff]
          %v1246 = vld [vmem:[%s5] sm:$0x1]
          %v1248 = vlaneseq
          %v1249 = vshrl.u32 %v1248, 7
          %v1250 = vsub.s32 0, %v1249
          %v1251 = vrot.slane %v1246, %v1250
          %1253 = vmatprep.subr.mxu0 0.0
          %1254 = vmatpush1.msra.mxu0 %v1245
          %1255 = vmatprep.subr.mxu0 0.0
          %1256 = vmatpush1.msra.mxu0 %v1244
          %1257 = vmatprep.subr.mxu0 0.0
          %1258 = vmatpush1.msra.mxu0 %v1243
          %1259 = vmatprep.subr.mxu0 0.0
          %1260 = vmatpush1.msra.mxu0 %v1242
          %1261 = vmatprep.subr.mxu0 0.0
          %1262 = vmatpush1.msra.mxu0 %v1241
          %1263 = vmatprep.subr.mxu0 0.0
          %1264 = vmatpush1.msra.mxu0 %v1240
          %1265 = vmatprep.subr.mxu0 0.0
          %1266 = vmatpush1.msra.mxu0 %v1239
          %1267 = vmatprep.subr.mxu0 0.0
          %1268 = vmatpush1.msra.mxu0 %v1238
          %1269 = vmatprep.subr.mxu0 0.0
          %1270 = vmatpush1.msra.mxu0 %v1237
          %1271 = vmatprep.subr.mxu0 0.0
          %1272 = vmatpush1.msra.mxu0 %v1236
          %1273 = vmatprep.subr.mxu0 0.0
          %1274 = vmatpush1.msra.mxu0 %v1235
          %1275 = vmatprep.subr.mxu0 0.0
          %1276 = vmatpush1.msra.mxu0 %v1234
          %1277 = vmatprep.subr.mxu0 0.0
          %1278 = vmatpush1.msra.mxu0 %v1233
          %1279 = vmatprep.subr.mxu0 0.0
          %1280 = vmatpush1.msra.mxu0 %v1232
          %1281 = vmatprep.subr.mxu0 0.0
          %1282 = vmatpush1.msra.mxu0 %v1231
          %1283 = vmatprep.subr.mxu0 0.0
          %1284 = vmatpush1.msra.mxu0 %v1230
          %1285 = vmatprep.subr.mxu0 0.0
          %1286 = vmatpush2.msra.mxu0 0.0
          %1287 = vmatprep.subr.mxu0 0.0
          %1288 = vmatpush2.msra.mxu0 0.0
          %1289 = vmatprep.subr.mxu0 0.0
          %1290 = vmatpush2.msra.mxu0 0.0
          %1291 = vmatprep.subr.mxu0 0.0
          %1292 = vmatpush2.msra.mxu0 0.0
          %1293 = vmatprep.subr.mxu0 0.0
          %1294 = vmatpush2.msra.mxu0 0.0
          %1295 = vmatprep.subr.mxu0 0.0
          %1296 = vmatpush2.msra.mxu0 0.0
          %1297 = vmatprep.subr.mxu0 0.0
          %1298 = vmatpush2.msra.mxu0 0.0
          %1299 = vmatprep.subr.mxu0 0.0
          %1300 = vmatpush2.msra.mxu0 0.0
          %1301 = vmatprep.subr.mxu0 0.0
          %1302 = vmatpush2.msra.mxu0 0.0
          %1303 = vmatprep.subr.mxu0 0.0
          %1304 = vmatpush2.msra.mxu0 0.0
          %1305 = vmatprep.subr.mxu0 0.0
          %1306 = vmatpush2.msra.mxu0 0.0
          %1307 = vmatprep.subr.mxu0 0.0
          %1308 = vmatpush2.msra.mxu0 0.0
          %1309 = vmatprep.subr.mxu0 0.0
          %1310 = vmatpush2.msra.mxu0 0.0
          %1311 = vmatprep.subr.mxu0 0.0
          %1312 = vmatpush2.msra.mxu0 0.0
          %1313 = vmatprep.subr.mxu0 0.0
          %1314 = vmatpush2.msra.mxu0 0.0
          %1315 = vmatprep.subr.mxu0 0.0
          %1316 = vmatpush2.msra.mxu0 0.0
          %1317 = vmatprep.mubr.f32.mxu0 0.0
          %1318 = vmatmul.mubr.f32.gmra.mxu0 %v1229
          %v1319 = vpop.f32.mrf.mxu0
          %v1320 = vadd.f32 %v1251, %v1319
          %v1321 = vpop.f32.mrf.mxu0
          %1322 = vdwg.mxu0
          %v1323 = vmax.f32 %v1320, 0.0
          %v1324 = vld [vmem:[%s6] sm:$0xff]
          %v1325 = vld [vmem:[%s6 + $0x8] sm:$0xff]
          %v1326 = vld [vmem:[%s6 + $0x10] sm:$0xff]
          %v1327 = vld [vmem:[%s6 + $0x18] sm:$0xff]
          %v1328 = vld [vmem:[%s6 + $0x20] sm:$0xff]
          %v1329 = vld [vmem:[%s6 + $0x28] sm:$0xff]
          %v1330 = vld [vmem:[%s6 + $0x30] sm:$0xff]
          %v1331 = vld [vmem:[%s6 + $0x38] sm:$0xff]
          %v1332 = vld [vmem:[%s6 + $0x40] sm:$0xff]
          %v1333 = vld [vmem:[%s6 + $0x48] sm:$0xff]
          %v1334 = vld [vmem:[%s6 + $0x50] sm:$0xff]
          %v1335 = vld [vmem:[%s6 + $0x58] sm:$0xff]
          %v1336 = vld [vmem:[%s6 + $0x60] sm:$0xff]
          %v1337 = vld [vmem:[%s6 + $0x68] sm:$0xff]
          %v1338 = vld [vmem:[%s6 + $0x70] sm:$0xff]
          %v1339 = vld [vmem:[%s6 + $0x78] sm:$0xff]
          %v1340 = vld [vmem:[%s7] sm:$0x1]
          %v1342 = vlaneseq
          %v1343 = vshrl.u32 %v1342, 7
          %v1344 = vsub.s32 0, %v1343
          %v1345 = vrot.slane %v1340, %v1344
          %1347 = vmatprep.subr.mxu0 0.0
          %1348 = vmatpush1.msra.mxu0 %v1339
          %1349 = vmatprep.subr.mxu0 0.0
          %1350 = vmatpush1.msra.mxu0 %v1338
          %1351 = vmatprep.subr.mxu0 0.0
          %1352 = vmatpush1.msra.mxu0 %v1337
          %1353 = vmatprep.subr.mxu0 0.0
          %1354 = vmatpush1.msra.mxu0 %v1336
          %1355 = vmatprep.subr.mxu0 0.0
          %1356 = vmatpush1.msra.mxu0 %v1335
          %1357 = vmatprep.subr.mxu0 0.0
          %1358 = vmatpush1.msra.mxu0 %v1334
          %1359 = vmatprep.subr.mxu0 0.0
          %1360 = vmatpush1.msra.mxu0 %v1333
          %1361 = vmatprep.subr.mxu0 0.0
          %1362 = vmatpush1.msra.mxu0 %v1332
          %1363 = vmatprep.subr.mxu0 0.0
          %1364 = vmatpush1.msra.mxu0 %v1331
          %1365 = vmatprep.subr.mxu0 0.0
          %1366 = vmatpush1.msra.mxu0 %v1330
          %1367 = vmatprep.subr.mxu0 0.0
          %1368 = vmatpush1.msra.mxu0 %v1329
          %1369 = vmatprep.subr.mxu0 0.0
          %1370 = vmatpush1.msra.mxu0 %v1328
          %1371 = vmatprep.subr.mxu0 0.0
          %1372 = vmatpush1.msra.mxu0 %v1327
          %1373 = vmatprep.subr.mxu0 0.0
          %1374 = vmatpush1.msra.mxu0 %v1326
          %1375 = vmatprep.subr.mxu0 0.0
          %1376 = vmatpush1.msra.mxu0 %v1325
          %1377 = vmatprep.subr.mxu0 0.0
          %1378 = vmatpush1.msra.mxu0 %v1324
          %1379 = vmatprep.subr.mxu0 0.0
          %1380 = vmatpush2.msra.mxu0 0.0
          %1381 = vmatprep.subr.mxu0 0.0
          %1382 = vmatpush2.msra.mxu0 0.0
          %1383 = vmatprep.subr.mxu0 0.0
          %1384 = vmatpush2.msra.mxu0 0.0
          %1385 = vmatprep.subr.mxu0 0.0
          %1386 = vmatpush2.msra.mxu0 0.0
          %1387 = vmatprep.subr.mxu0 0.0
          %1388 = vmatpush2.msra.mxu0 0.0
          %1389 = vmatprep.subr.mxu0 0.0
          %1390 = vmatpush2.msra.mxu0 0.0
          %1391 = vmatprep.subr.mxu0 0.0
          %1392 = vmatpush2.msra.mxu0 0.0
          %1393 = vmatprep.subr.mxu0 0.0
          %1394 = vmatpush2.msra.mxu0 0.0
          %1395 = vmatprep.subr.mxu0 0.0
          %1396 = vmatpush2.msra.mxu0 0.0
          %1397 = vmatprep.subr.mxu0 0.0
          %1398 = vmatpush2.msra.mxu0 0.0
          %1399 = vmatprep.subr.mxu0 0.0
          %1400 = vmatpush2.msra.mxu0 0.0
          %1401 = vmatprep.subr.mxu0 0.0
          %1402 = vmatpush2.msra.mxu0 0.0
          %1403 = vmatprep.subr.mxu0 0.0
          %1404 = vmatpush2.msra.mxu0 0.0
          %1405 = vmatprep.subr.mxu0 0.0
          %1406 = vmatpush2.msra.mxu0 0.0
          %1407 = vmatprep.subr.mxu0 0.0
          %1408 = vmatpush2.msra.mxu0 0.0
          %1409 = vmatprep.subr.mxu0 0.0
          %1410 = vmatpush2.msra.mxu0 0.0
          %1411 = vmatprep.mubr.f32.mxu0 0.0
          %1412 = vmatmul.mubr.f32.gmra.mxu0 %v1323
          %v1413 = vpop.f32.mrf.mxu0
          %v1414 = vadd.f32 %v1345, %v1413
          %v1415 = vpop.f32.mrf.mxu0
          %1416 = vdwg.mxu0
          %v1417 = vmax.f32 %v1414, 0.0
          %v1418 = vld [vmem:[%s8] sm:$0xff]
          %v1419 = vld [vmem:[%s8 + $0x8] sm:$0xff]
          %v1420 = vld [vmem:[%s8 + $0x10] sm:$0xff]
          %v1421 = vld [vmem:[%s8 + $0x18] sm:$0xff]
          %v1422 = vld [vmem:[%s8 + $0x20] sm:$0xff]
          %v1423 = vld [vmem:[%s8 + $0x28] sm:$0xff]
          %v1424 = vld [vmem:[%s8 + $0x30] sm:$0xff]
          %v1425 = vld [vmem:[%s8 + $0x38] sm:$0xff]
          %v1426 = vld [vmem:[%s8 + $0x40] sm:$0xff]
          %v1427 = vld [vmem:[%s8 + $0x48] sm:$0xff]
          %v1428 = vld [vmem:[%s8 + $0x50] sm:$0xff]
          %v1429 = vld [vmem:[%s8 + $0x58] sm:$0xff]
          %v1430 = vld [vmem:[%s8 + $0x60] sm:$0xff]
          %v1431 = vld [vmem:[%s8 + $0x68] sm:$0xff]
          %v1432 = vld [vmem:[%s8 + $0x70] sm:$0xff]
          %v1433 = vld [vmem:[%s8 + $0x78] sm:$0xff]
          %v1434 = vld [vmem:[%s9] sm:$0x1]
          %v1436 = vlaneseq
          %v1437 = vshrl.u32 %v1436, 7
          %v1438 = vsub.s32 0, %v1437
          %v1439 = vrot.slane %v1434, %v1438
          %1441 = vmatprep.subr.mxu0 0.0
          %1442 = vmatpush1.msra.mxu0 %v1433
          %1443 = vmatprep.subr.mxu0 0.0
          %1444 = vmatpush1.msra.mxu0 %v1432
          %1445 = vmatprep.subr.mxu0 0.0
          %1446 = vmatpush1.msra.mxu0 %v1431
          %1447 = vmatprep.subr.mxu0 0.0
          %1448 = vmatpush1.msra.mxu0 %v1430
          %1449 = vmatprep.subr.mxu0 0.0
          %1450 = vmatpush1.msra.mxu0 %v1429
          %1451 = vmatprep.subr.mxu0 0.0
          %1452 = vmatpush1.msra.mxu0 %v1428
          %1453 = vmatprep.subr.mxu0 0.0
          %1454 = vmatpush1.msra.mxu0 %v1427
          %1455 = vmatprep.subr.mxu0 0.0
          %1456 = vmatpush1.msra.mxu0 %v1426
          %1457 = vmatprep.subr.mxu0 0.0
          %1458 = vmatpush1.msra.mxu0 %v1425
          %1459 = vmatprep.subr.mxu0 0.0
          %1460 = vmatpush1.msra.mxu0 %v1424
          %1461 = vmatprep.subr.mxu0 0.0
          %1462 = vmatpush1.msra.mxu0 %v1423
          %1463 = vmatprep.subr.mxu0 0.0
          %1464 = vmatpush1.msra.mxu0 %v1422
          %1465 = vmatprep.subr.mxu0 0.0
          %1466 = vmatpush1.msra.mxu0 %v1421
          %1467 = vmatprep.subr.mxu0 0.0
          %1468 = vmatpush1.msra.mxu0 %v1420
          %1469 = vmatprep.subr.mxu0 0.0
          %1470 = vmatpush1.msra.mxu0 %v1419
          %1471 = vmatprep.subr.mxu0 0.0
          %1472 = vmatpush1.msra.mxu0 %v1418
          %1473 = vmatprep.subr.mxu0 0.0
          %1474 = vmatpush2.msra.mxu0 0.0
          %1475 = vmatprep.subr.mxu0 0.0
          %1476 = vmatpush2.msra.mxu0 0.0
          %1477 = vmatprep.subr.mxu0 0.0
          %1478 = vmatpush2.msra.mxu0 0.0
          %1479 = vmatprep.subr.mxu0 0.0
          %1480 = vmatpush2.msra.mxu0 0.0
          %1481 = vmatprep.subr.mxu0 0.0
          %1482 = vmatpush2.msra.mxu0 0.0
          %1483 = vmatprep.subr.mxu0 0.0
          %1484 = vmatpush2.msra.mxu0 0.0
          %1485 = vmatprep.subr.mxu0 0.0
          %1486 = vmatpush2.msra.mxu0 0.0
          %1487 = vmatprep.subr.mxu0 0.0
          %1488 = vmatpush2.msra.mxu0 0.0
          %1489 = vmatprep.subr.mxu0 0.0
          %1490 = vmatpush2.msra.mxu0 0.0
          %1491 = vmatprep.subr.mxu0 0.0
          %1492 = vmatpush2.msra.mxu0 0.0
          %1493 = vmatprep.subr.mxu0 0.0
          %1494 = vmatpush2.msra.mxu0 0.0
          %1495 = vmatprep.subr.mxu0 0.0
          %1496 = vmatpush2.msra.mxu0 0.0
          %1497 = vmatprep.subr.mxu0 0.0
          %1498 = vmatpush2.msra.mxu0 0.0
          %1499 = vmatprep.subr.mxu0 0.0
          %1500 = vmatpush2.msra.mxu0 0.0
          %1501 = vmatprep.subr.mxu0 0.0
          %1502 = vmatpush2.msra.mxu0 0.0
          %1503 = vmatprep.subr.mxu0 0.0
          %1504 = vmatpush2.msra.mxu0 0.0
          %1505 = vmatprep.mubr.f32.mxu0 0.0
          %1506 = vmatmul.mubr.f32.gmra.mxu0 %v1417
          %v1507 = vpop.f32.mrf.mxu0
          %v1508 = vadd.f32 %v1439, %v1507
          %v1509 = vpop.f32.mrf.mxu0
          %1510 = vdwg.mxu0
          %1511 = vst [vmem:[#allocation5] sm:$0xff] %v1508
        $region68: #{tpu_custom_call.1} parent=59 // pred_fallthru
          _
        // Predicated region
        $region69: #{tpu_custom_call.1} parent=59 // pred_check
          %p1512 = pneg %p255
        $region70: #{tpu_custom_call.1} parent=59 // pred_check_branch
          %1514 = sbr.rel (%p1512) target = $region72
        $region71: #{tpu_custom_call.1} parent=59 // pred_region
          %s1516 = ssub.s32 128, 128
          %1517 = vsyncadd [#allocation6], %s1516
          %s1519 = sshll.u32 [#allocation5], 4
          %s1520 = int_to_ptr.vmem [resolvable:$true] %s1519
          %1522 = dma.vmem_to_hbm [thread:$0]  %s1520, 128, %s10, [#allocation6]
        $region72: #{tpu_custom_call.1} parent=59 // pred_fallthru
          _
        // Predicated region
        $region73: #{tpu_custom_call.1} parent=59 // pred_check
          %p1523 = pneg %p255
        $region74: #{tpu_custom_call.1} parent=59 // pred_check_branch
          %1525 = sbr.rel (%p1523) target = $region76
        $region75: #{tpu_custom_call.1} parent=59 // pred_region
          %1526 = dma.done [#allocation6], 128
        $region76: #{tpu_custom_call.1} parent=59 // pred_fallthru
          _
      $region60: #{tpu_custom_call.1} parent=5 // pred_fallthru
        _
      %p1527 = scmp.le.s32.totalorder 2, %s17
      // Predicated region
      $region77: #{tpu_custom_call.1} parent=5 // pred_check
        %p1528 = pneg %p1527
      $region78: #{tpu_custom_call.1} parent=5 // pred_check_branch
        %1530 = sbr.rel (%p1528) target = $region80
      $region79: #{tpu_custom_call.1} parent=5 // pred_region
        %s1531 = ssub.s32 %s17, 2
      $region80: #{tpu_custom_call.1} parent=5 // pred_fallthru
        _
    $region6: #{tpu_custom_call.1} parent=1 // loop_footer
      %s21 = sadd.s32 1, %s17
    $region7: #{tpu_custom_call.1} parent=1 // loop_footer_branch
      %16 = sbr.rel target = $region3
    $region8: #{tpu_custom_call.1} parent=1 // loop_exit
      _
    %1532 = vsyncpa [#allocation6], 1
    %s1533 = scalar_lea.sflag [#allocation6], 1
    %1534 = vsyncpa %s1533, 1

</llo_original>
